<compile_context>
chip_gen: v7x
topology: tpu7x:2x2x1
jax: 0.10.0
libtpu: 0.0.40
codegen_flags: <defaults>
</compile_context>

<pallas_src>
import functools

import jax
import jax.numpy as jnp
from jax import lax
from jax.experimental import pallas as pl
from jax.experimental.pallas import tpu as pltpu


def make_fused_kernel(T, Bp, H, n_layers):
    G4 = 4 * H          # per-direction gate width (i,f,g,o)
    B2 = 2 * Bp         # fwd rows [0:Bp], bwd rows [Bp:2Bp]

    def kernel(*refs):
        # ---- parse refs: inputs, output, scratch -------------------------
        x_ref = refs[0]
        off = 1
        layer_refs = []
        for _ in range(n_layers):
            layer_refs.append(refs[off:off + 3])   # wih_cat(bf16), b_cat, whh_cat(bf16)
            off += 3
        gamma_ref, beta_ref, fcw_ref, fcb_ref = refs[off:off + 4]
        off += 4
        out_ref = refs[off]
        seq_scr = [refs[off + 1], refs[off + 2]]   # ping-pong layer outputs (T*Bp, 2H)
        proj_ref = refs[off + 3]                   # hoisted input projection (T*Bp, 8H)

        # ---- stacked bidirectional LSTM ----------------------------------
        for l in range(n_layers):
            wih_ref, b_ref, whh_ref = layer_refs[l]
            src = x_ref if l == 0 else seq_scr[(l - 1) % 2]
            dst = seq_scr[l % 2]

            # Input projection for ALL timesteps and BOTH directions in one
            # bf16 matmul (off the serial critical path), bias folded in.
            proj_ref[...] = (
                jnp.dot(src[...].astype(jnp.bfloat16), wih_ref[...],
                        preferred_element_type=jnp.float32)
                + b_ref[...])                                  # (T*Bp, 8H) f32

            whh_cat = whh_ref[...]                             # (H, 8H) bf16

            def step(t, carry):
                h, c = carry                                   # (2Bp, H) f32
                fr = pl.multiple_of(t * Bp, Bp)                # fwd-time row offset
                br = pl.multiple_of((T - 1 - t) * Bp, Bp)      # bwd-time row offset

                # ONE fused recurrence matmul for both directions.
                r = jnp.dot(h.astype(jnp.bfloat16), whh_cat,
                            preferred_element_type=jnp.float32)    # (2Bp, 8H)

                # Aligned full-tile (8,128) projection loads + vreg-aligned adds.
                g_f = proj_ref[pl.ds(fr, Bp), pl.ds(0, G4)] + r[:Bp, 0:G4]
                g_b = proj_ref[pl.ds(br, Bp), pl.ds(G4, G4)] + r[Bp:, G4:2 * G4]
                # 8-row-aligned stack -> two whole vregs, no cross-sublane move.
                gates = jnp.concatenate([g_f, g_b], axis=0)        # (2Bp, 4H)

                sg = jax.nn.sigmoid(gates)                 # i,f,o (g lanes unused)
                tg = jnp.tanh(gates[:, 2 * H:3 * H])       # tanh only on g slice
                c_new = sg[:, H:2 * H] * c + sg[:, 0:H] * tg
                h_new = sg[:, 3 * H:4 * H] * jnp.tanh(c_new)

                dst[pl.ds(fr, Bp), pl.ds(0, H)] = h_new[:Bp]      # fwd out @ t
                dst[pl.ds(br, Bp), pl.ds(H, H)] = h_new[Bp:]      # bwd out @ T-1-t
                return h_new, c_new

            h0 = jnp.zeros((B2, H), jnp.float32)
            lax.fori_loop(0, T, step, (h0, h0))

        # ---- classifier head on last-timestep features --------------------
        last = seq_scr[(n_layers - 1) % 2]
        z = last[(T - 1) * Bp:T * Bp, :]                     # (Bp, 2H) == out[:, -1]
        z = jnp.maximum(z, 0.0)                              # ReLU
        inv_std = jnp.float32(1.0 / (1.0 + 1e-5) ** 0.5)     # BN eval: mean 0, var 1
        z = z * (gamma_ref[...] * inv_std) + beta_ref[...]
        logits = jnp.dot(z.astype(jnp.bfloat16), fcw_ref[...],
                         preferred_element_type=jnp.float32) + fcb_ref[...]
        m = jnp.max(logits, axis=-1, keepdims=True)
        lse = m + jnp.log(jnp.sum(jnp.exp(logits - m), axis=-1, keepdims=True))
        out_ref[...] = logits - lse                          # LogSoftmax (lane-dense)

    return kernel


def init_params(key, input_size, hidden_size, output_size, n_layers, lane_pad=128):
    H = hidden_size
    k = 1.0 / jnp.sqrt(jnp.float32(H))
    lstm = []
    for layer in range(n_layers):
        d_in = input_size if layer == 0 else 2 * H
        dirs = {}
        for d in ("f", "b"):
            key, k1, k2, k3, k4 = jax.random.split(key, 5)
            wih = jax.random.uniform(k1, (d_in, 4 * H), jnp.float32, -k, k)
            whh = jax.random.uniform(k2, (H, 4 * H), jnp.float32, -k, k)
            b_ih = jax.random.uniform(k3, (4 * H,), jnp.float32, -k, k)
            b_hh = jax.random.uniform(k4, (4 * H,), jnp.float32, -k, k)
            dirs[d] = (wih, whh, (b_ih + b_hh).reshape(1, 4 * H))
        lstm.append({
            # fwd | bwd side-by-side along lanes -> single projection /
            # single fused recurrence matmul per step.
            "wih_cat": jnp.concatenate([dirs["f"][0], dirs["b"][0]], axis=1),
            "b_cat": jnp.concatenate([dirs["f"][2], dirs["b"][2]], axis=1),
            "whh_cat": jnp.concatenate([dirs["f"][1], dirs["b"][1]], axis=1),
        })

    key, k5, k6, k7, k8 = jax.random.split(key, 5)
    F = 2 * H
    kf = 1.0 / jnp.sqrt(jnp.float32(F))
    fc_w = jax.random.uniform(k7, (F, output_size), jnp.float32, -kf, kf)
    fc_b = jax.random.uniform(k8, (output_size,), jnp.float32, -kf, kf)
    O_pad = max(lane_pad, output_size)
    # zero weights + -1e30 bias on padded lanes -> exp()==0 -> exact log-softmax
    fc_w_pad = jnp.zeros((F, O_pad), jnp.float32).at[:, :output_size].set(fc_w)
    fc_b_pad = jnp.full((1, O_pad), -1e30, jnp.float32).at[0, :output_size].set(fc_b)
    return {
        "lstm": lstm,
        "bn_gamma": jax.random.uniform(k5, (1, F), jnp.float32, 0.5, 1.5),
        "bn_beta": jax.random.uniform(k6, (1, F), jnp.float32, -0.5, 0.5),
        "fc_w_pad": fc_w_pad,
        "fc_b_pad": fc_b_pad,
    }


@functools.partial(jax.jit, static_argnames=("output_size",))
def sequence_classifier_forward(x, params, output_size):
    # x: (B, T, input_size), batch_first like PyTorch
    B, T, D = x.shape
    n_layers = len(params["lstm"])
    H = params["lstm"][0]["whh_cat"].shape[0]
    O_pad = params["fc_w_pad"].shape[1]
    Bp = ((B + 7) // 8) * 8          # pad batch to fp32 sublane tile (8)

    # time-major rows [t*Bp + b]; padded rows are zeros (results discarded)
    xt = jnp.transpose(x, (1, 0, 2)).astype(jnp.float32)              # (T, B, D)
    x2d = jnp.zeros((T, Bp, D), jnp.float32).at[:, :B, :].set(xt).reshape(T * Bp, D)

    inputs = [x2d]
    for p in params["lstm"]:
        inputs += [p["wih_cat"].astype(jnp.bfloat16),
                   p["b_cat"],
                   p["whh_cat"].astype(jnp.bfloat16)]
    inputs += [params["bn_gamma"], params["bn_beta"],
               params["fc_w_pad"].astype(jnp.bfloat16), params["fc_b_pad"]]

    vmem = pltpu.MemorySpace.VMEM
    out_pad = pl.pallas_call(
        make_fused_kernel(T, Bp, H, n_layers),
        out_shape=jax.ShapeDtypeStruct((Bp, O_pad), jnp.float32),
        in_specs=[pl.BlockSpec(memory_space=vmem)] * len(inputs),
        out_specs=pl.BlockSpec(memory_space=vmem),
        scratch_shapes=[
            # NOTE: these grow with T*Bp*H; tile the projection over T before
            # running at production sizes (v7x VMEM = 64 MiB).
            pltpu.VMEM((T * Bp, 2 * H), jnp.float32),   # layer output (ping)
            pltpu.VMEM((T * Bp, 2 * H), jnp.float32),   # layer output (pong)
            pltpu.VMEM((T * Bp, 8 * H), jnp.float32),   # hoisted input projection
        ],
        compiler_params=pltpu.CompilerParams(vmem_limit_bytes=32 * 1024 * 1024),
    )(*inputs)
    return out_pad[:B, :output_size]


if __name__ == "__main__":
    B, T = 2, 8
    INPUT_SIZE, HIDDEN_SIZE, OUTPUT_SIZE, N_LAYERS = 16, 32, 10, 4

    key = jax.random.PRNGKey(0)
    key, xk = jax.random.split(key)
    x = jax.random.normal(xk, (B, T, INPUT_SIZE), jnp.float32)

    params = init_params(key, INPUT_SIZE, HIDDEN_SIZE, OUTPUT_SIZE, N_LAYERS)

    y = sequence_classifier_forward(x, params, output_size=OUTPUT_SIZE)
    y = jax.block_until_ready(y)

    assert y.shape == (B, OUTPUT_SIZE)
    # log-softmax rows should (approximately) sum to 1 in prob space
    assert jnp.allclose(jnp.sum(jnp.exp(y), axis=-1), 1.0, atol=1e-3)
    print("KERNEL_OK")
</pallas_src>

<mosaic_0001>
module attributes {stable_mosaic.version = 11 : i64} {
  func.func @kernel(%arg0: memref<64x16xf32, #tpu.memory_space<vmem>>, %arg1: memref<16x256xbf16, #tpu.memory_space<vmem>>, %arg2: memref<1x256xf32, #tpu.memory_space<vmem>>, %arg3: memref<32x256xbf16, #tpu.memory_space<vmem>>, %arg4: memref<64x256xbf16, #tpu.memory_space<vmem>>, %arg5: memref<1x256xf32, #tpu.memory_space<vmem>>, %arg6: memref<32x256xbf16, #tpu.memory_space<vmem>>, %arg7: memref<64x256xbf16, #tpu.memory_space<vmem>>, %arg8: memref<1x256xf32, #tpu.memory_space<vmem>>, %arg9: memref<32x256xbf16, #tpu.memory_space<vmem>>, %arg10: memref<64x256xbf16, #tpu.memory_space<vmem>>, %arg11: memref<1x256xf32, #tpu.memory_space<vmem>>, %arg12: memref<32x256xbf16, #tpu.memory_space<vmem>>, %arg13: memref<1x64xf32, #tpu.memory_space<vmem>>, %arg14: memref<1x64xf32, #tpu.memory_space<vmem>>, %arg15: memref<64x128xbf16, #tpu.memory_space<vmem>>, %arg16: memref<1x128xf32, #tpu.memory_space<vmem>>, %arg17: memref<8x128xf32, #tpu.memory_space<vmem>>, %arg18: memref<64x64xf32, #tpu.memory_space<vmem>>, %arg19: memref<64x64xf32, #tpu.memory_space<vmem>>, %arg20: memref<64x256xf32, #tpu.memory_space<vmem>>) attributes {dimension_semantics = [], scalar_prefetch = 0 : i64, scratch_operands = 3 : i64, tpu.core_type = #tpu.core_type<tc>} {
    %c0 = arith.constant 0 : index
    %c0_0 = arith.constant 0 : index
    %0 = vector.load %arg0[%c0, %c0_0] : memref<64x16xf32, #tpu.memory_space<vmem>>, vector<64x16xf32>
    %1 = arith.truncf %0 : vector<64x16xf32> to vector<64x16xbf16>
    %c0_1 = arith.constant 0 : index
    %c0_2 = arith.constant 0 : index
    %2 = vector.load %arg1[%c0_1, %c0_2] : memref<16x256xbf16, #tpu.memory_space<vmem>>, vector<16x256xbf16>
    %cst = arith.constant dense<0.000000e+00> : vector<64x256xf32>
    %3 = tpu.matmul %1, %2, %cst {dimension_numbers = #tpu.dot_dimension_numbers<[1], [0], [0], [1], [0, 0, 1, 1], [], []>} : vector<64x16xbf16>, vector<16x256xbf16>, vector<64x256xf32> -> vector<64x256xf32>
    %c0_3 = arith.constant 0 : index
    %c0_4 = arith.constant 0 : index
    %4 = vector.load %arg2[%c0_3, %c0_4] : memref<1x256xf32, #tpu.memory_space<vmem>>, vector<1x256xf32>
    %5 = vector.broadcast %4 : vector<1x256xf32> to vector<64x256xf32>
    %6 = arith.addf %3, %5 : vector<64x256xf32>
    %c0_5 = arith.constant 0 : index
    %c0_6 = arith.constant 0 : index
    %7 = vector.load %arg20[%c0_5, %c0_6] : memref<64x256xf32, #tpu.memory_space<vmem>>, vector<64x256xf32>
    tpu.vector_store %arg20[%c0_5, %c0_6], %6 {strides = array<i32>} : memref<64x256xf32, #tpu.memory_space<vmem>>, vector<64x256xf32>,
    %c0_7 = arith.constant 0 : index
    %c0_8 = arith.constant 0 : index
    %8 = vector.load %arg3[%c0_7, %c0_8] : memref<32x256xbf16, #tpu.memory_space<vmem>>, vector<32x256xbf16>
    %cst_9 = arith.constant 0.000000e+00 : f32
    %9 = vector.broadcast %cst_9 : f32 to vector<16x32xf32>
    %c0_i32 = arith.constant 0 : i32
    %c8_i32 = arith.constant 8 : i32
    %10 = arith.addi %c0_i32, %c8_i32 : i32
    %c1_i32 = arith.constant 1 : i32
    %11:2 = scf.for %arg21 = %c0_i32 to %10 step %c1_i32 iter_args(%arg22 = %9, %arg23 = %9) -> (vector<16x32xf32>, vector<16x32xf32>)  : i32 {
      %c8_i32_75 = arith.constant 8 : i32
      %77 = arith.muli %arg21, %c8_i32_75 : i32
      %78 = tpu.assume_multiple %77, 8 : i32
      %c7_i32 = arith.constant 7 : i32
      %79 = arith.subi %c7_i32, %arg21 : i32
      %c8_i32_76 = arith.constant 8 : i32
      %80 = arith.muli %79, %c8_i32_76 : i32
      %81 = tpu.assume_multiple %80, 8 : i32
      %82 = arith.truncf %arg22 : vector<16x32xf32> to vector<16x32xbf16>
      %cst_77 = arith.constant dense<0.000000e+00> : vector<16x256xf32>
      %83 = tpu.matmul %82, %8, %cst_77 {dimension_numbers = #tpu.dot_dimension_numbers<[1], [0], [0], [1], [0, 0, 1, 1], [], []>} : vector<16x32xbf16>, vector<32x256xbf16>, vector<16x256xf32> -> vector<16x256xf32>
      %84 = arith.index_cast %78 : i32 to index
      %c0_78 = arith.constant 0 : index
      %85 = vector.load %arg20[%84, %c0_78] : memref<64x256xf32, #tpu.memory_space<vmem>>, vector<8x128xf32>
      %86 = vector.extract_strided_slice %83 {offsets = [0, 0], sizes = [8, 128], strides = [1, 1]} : vector<16x256xf32> to vector<8x128xf32>
      %87 = arith.addf %85, %86 : vector<8x128xf32>
      %88 = arith.index_cast %81 : i32 to index
      %c128 = arith.constant 128 : index
      %89 = vector.load %arg20[%88, %c128] : memref<64x256xf32, #tpu.memory_space<vmem>>, vector<8x128xf32>
      %90 = vector.extract_strided_slice %83 {offsets = [8, 128], sizes = [8, 128], strides = [1, 1]} : vector<16x256xf32> to vector<8x128xf32>
      %91 = arith.addf %89, %90 : vector<8x128xf32>
      %92 = tpu.concatenate %87, %91 in 0 : vector<8x128xf32>, vector<8x128xf32> -> vector<16x128xf32>
      %93 = arith.negf %92 : vector<16x128xf32>
      %94 = math.exp %93 : vector<16x128xf32>
      %cst_79 = arith.constant 1.000000e+00 : f32
      %95 = vector.broadcast %cst_79 : f32 to vector<16x128xf32>
      %96 = arith.addf %95, %94 : vector<16x128xf32>
      %97 = arith.divf %95, %96 : vector<16x128xf32>
      %98 = vector.extract_strided_slice %92 {offsets = [0, 64], sizes = [16, 32], strides = [1, 1]} : vector<16x128xf32> to vector<16x32xf32>
      %99 = math.tanh %98 : vector<16x32xf32>
      %100 = vector.extract_strided_slice %97 {offsets = [0, 32], sizes = [16, 32], strides = [1, 1]} : vector<16x128xf32> to vector<16x32xf32>
      %101 = arith.mulf %100, %arg23 : vector<16x32xf32>
      %102 = vector.extract_strided_slice %97 {offsets = [0, 0], sizes = [16, 32], strides = [1, 1]} : vector<16x128xf32> to vector<16x32xf32>
      %103 = arith.mulf %102, %99 : vector<16x32xf32>
      %104 = arith.addf %101, %103 : vector<16x32xf32>
      %105 = vector.extract_strided_slice %97 {offsets = [0, 96], sizes = [16, 32], strides = [1, 1]} : vector<16x128xf32> to vector<16x32xf32>
      %106 = math.tanh %104 : vector<16x32xf32>
      %107 = arith.mulf %105, %106 : vector<16x32xf32>
      %108 = vector.extract_strided_slice %107 {offsets = [0, 0], sizes = [8, 32], strides = [1, 1]} : vector<16x32xf32> to vector<8x32xf32>
      %109 = arith.index_cast %78 : i32 to index
      %c0_80 = arith.constant 0 : index
      %110 = vector.load %arg18[%109, %c0_80] : memref<64x64xf32, #tpu.memory_space<vmem>>, vector<8x32xf32>
      tpu.vector_store %arg18[%109, %c0_80], %108 {strides = array<i32>} : memref<64x64xf32, #tpu.memory_space<vmem>>, vector<8x32xf32>,
      %111 = vector.extract_strided_slice %107 {offsets = [8, 0], sizes = [8, 32], strides = [1, 1]} : vector<16x32xf32> to vector<8x32xf32>
      %112 = arith.index_cast %81 : i32 to index
      %c32 = arith.constant 32 : index
      %113 = vector.load %arg18[%112, %c32] : memref<64x64xf32, #tpu.memory_space<vmem>>, vector<8x32xf32>
      tpu.vector_store %arg18[%112, %c32], %111 {strides = array<i32>} : memref<64x64xf32, #tpu.memory_space<vmem>>, vector<8x32xf32>,
      scf.yield %107, %104 : vector<16x32xf32>, vector<16x32xf32>
    }
    %c8_i32_10 = arith.constant 8 : i32
    %c0_11 = arith.constant 0 : index
    %c0_12 = arith.constant 0 : index
    %12 = vector.load %arg18[%c0_11, %c0_12] : memref<64x64xf32, #tpu.memory_space<vmem>>, vector<64x64xf32>
    %13 = arith.truncf %12 : vector<64x64xf32> to vector<64x64xbf16>
    %c0_13 = arith.constant 0 : index
    %c0_14 = arith.constant 0 : index
    %14 = vector.load %arg4[%c0_13, %c0_14] : memref<64x256xbf16, #tpu.memory_space<vmem>>, vector<64x256xbf16>
    %cst_15 = arith.constant dense<0.000000e+00> : vector<64x256xf32>
    %15 = tpu.matmul %13, %14, %cst_15 {dimension_numbers = #tpu.dot_dimension_numbers<[1], [0], [0], [1], [0, 0, 1, 1], [], []>} : vector<64x64xbf16>, vector<64x256xbf16>, vector<64x256xf32> -> vector<64x256xf32>
    %c0_16 = arith.constant 0 : index
    %c0_17 = arith.constant 0 : index
    %16 = vector.load %arg5[%c0_16, %c0_17] : memref<1x256xf32, #tpu.memory_space<vmem>>, vector<1x256xf32>
    %17 = vector.broadcast %16 : vector<1x256xf32> to vector<64x256xf32>
    %18 = arith.addf %15, %17 : vector<64x256xf32>
    %c0_18 = arith.constant 0 : index
    %c0_19 = arith.constant 0 : index
    %19 = vector.load %arg20[%c0_18, %c0_19] : memref<64x256xf32, #tpu.memory_space<vmem>>, vector<64x256xf32>
    tpu.vector_store %arg20[%c0_18, %c0_19], %18 {strides = array<i32>} : memref<64x256xf32, #tpu.memory_space<vmem>>, vector<64x256xf32>,
    %c0_20 = arith.constant 0 : index
    %c0_21 = arith.constant 0 : index
    %20 = vector.load %arg6[%c0_20, %c0_21] : memref<32x256xbf16, #tpu.memory_space<vmem>>, vector<32x256xbf16>
    %cst_22 = arith.constant 0.000000e+00 : f32
    %21 = vector.broadcast %cst_22 : f32 to vector<16x32xf32>
    %c0_i32_23 = arith.constant 0 : i32
    %c8_i32_24 = arith.constant 8 : i32
    %22 = arith.addi %c0_i32_23, %c8_i32_24 : i32
    %c1_i32_25 = arith.constant 1 : i32
    %23:2 = scf.for %arg21 = %c0_i32_23 to %22 step %c1_i32_25 iter_args(%arg22 = %21, %arg23 = %21) -> (vector<16x32xf32>, vector<16x32xf32>)  : i32 {
      %c8_i32_75 = arith.constant 8 : i32
      %77 = arith.muli %arg21, %c8_i32_75 : i32
      %78 = tpu.assume_multiple %77, 8 : i32
      %c7_i32 = arith.constant 7 : i32
      %79 = arith.subi %c7_i32, %arg21 : i32
      %c8_i32_76 = arith.constant 8 : i32
      %80 = arith.muli %79, %c8_i32_76 : i32
      %81 = tpu.assume_multiple %80, 8 : i32
      %82 = arith.truncf %arg22 : vector<16x32xf32> to vector<16x32xbf16>
      %cst_77 = arith.constant dense<0.000000e+00> : vector<16x256xf32>
      %83 = tpu.matmul %82, %20, %cst_77 {dimension_numbers = #tpu.dot_dimension_numbers<[1], [0], [0], [1], [0, 0, 1, 1], [], []>} : vector<16x32xbf16>, vector<32x256xbf16>, vector<16x256xf32> -> vector<16x256xf32>
      %84 = arith.index_cast %78 : i32 to index
      %c0_78 = arith.constant 0 : index
      %85 = vector.load %arg20[%84, %c0_78] : memref<64x256xf32, #tpu.memory_space<vmem>>, vector<8x128xf32>
      %86 = vector.extract_strided_slice %83 {offsets = [0, 0], sizes = [8, 128], strides = [1, 1]} : vector<16x256xf32> to vector<8x128xf32>
      %87 = arith.addf %85, %86 : vector<8x128xf32>
      %88 = arith.index_cast %81 : i32 to index
      %c128 = arith.constant 128 : index
      %89 = vector.load %arg20[%88, %c128] : memref<64x256xf32, #tpu.memory_space<vmem>>, vector<8x128xf32>
      %90 = vector.extract_strided_slice %83 {offsets = [8, 128], sizes = [8, 128], strides = [1, 1]} : vector<16x256xf32> to vector<8x128xf32>
      %91 = arith.addf %89, %90 : vector<8x128xf32>
      %92 = tpu.concatenate %87, %91 in 0 : vector<8x128xf32>, vector<8x128xf32> -> vector<16x128xf32>
      %93 = arith.negf %92 : vector<16x128xf32>
      %94 = math.exp %93 : vector<16x128xf32>
      %cst_79 = arith.constant 1.000000e+00 : f32
      %95 = vector.broadcast %cst_79 : f32 to vector<16x128xf32>
      %96 = arith.addf %95, %94 : vector<16x128xf32>
      %97 = arith.divf %95, %96 : vector<16x128xf32>
      %98 = vector.extract_strided_slice %92 {offsets = [0, 64], sizes = [16, 32], strides = [1, 1]} : vector<16x128xf32> to vector<16x32xf32>
      %99 = math.tanh %98 : vector<16x32xf32>
      %100 = vector.extract_strided_slice %97 {offsets = [0, 32], sizes = [16, 32], strides = [1, 1]} : vector<16x128xf32> to vector<16x32xf32>
      %101 = arith.mulf %100, %arg23 : vector<16x32xf32>
      %102 = vector.extract_strided_slice %97 {offsets = [0, 0], sizes = [16, 32], strides = [1, 1]} : vector<16x128xf32> to vector<16x32xf32>
      %103 = arith.mulf %102, %99 : vector<16x32xf32>
      %104 = arith.addf %101, %103 : vector<16x32xf32>
      %105 = vector.extract_strided_slice %97 {offsets = [0, 96], sizes = [16, 32], strides = [1, 1]} : vector<16x128xf32> to vector<16x32xf32>
      %106 = math.tanh %104 : vector<16x32xf32>
      %107 = arith.mulf %105, %106 : vector<16x32xf32>
      %108 = vector.extract_strided_slice %107 {offsets = [0, 0], sizes = [8, 32], strides = [1, 1]} : vector<16x32xf32> to vector<8x32xf32>
      %109 = arith.index_cast %78 : i32 to index
      %c0_80 = arith.constant 0 : index
      %110 = vector.load %arg19[%109, %c0_80] : memref<64x64xf32, #tpu.memory_space<vmem>>, vector<8x32xf32>
      tpu.vector_store %arg19[%109, %c0_80], %108 {strides = array<i32>} : memref<64x64xf32, #tpu.memory_space<vmem>>, vector<8x32xf32>,
      %111 = vector.extract_strided_slice %107 {offsets = [8, 0], sizes = [8, 32], strides = [1, 1]} : vector<16x32xf32> to vector<8x32xf32>
      %112 = arith.index_cast %81 : i32 to index
      %c32 = arith.constant 32 : index
      %113 = vector.load %arg19[%112, %c32] : memref<64x64xf32, #tpu.memory_space<vmem>>, vector<8x32xf32>
      tpu.vector_store %arg19[%112, %c32], %111 {strides = array<i32>} : memref<64x64xf32, #tpu.memory_space<vmem>>, vector<8x32xf32>,
      scf.yield %107, %104 : vector<16x32xf32>, vector<16x32xf32>
    }
    %c8_i32_26 = arith.constant 8 : i32
    %c0_27 = arith.constant 0 : index
    %c0_28 = arith.constant 0 : index
    %24 = vector.load %arg19[%c0_27, %c0_28] : memref<64x64xf32, #tpu.memory_space<vmem>>, vector<64x64xf32>
    %25 = arith.truncf %24 : vector<64x64xf32> to vector<64x64xbf16>
    %c0_29 = arith.constant 0 : index
    %c0_30 = arith.constant 0 : index
    %26 = vector.load %arg7[%c0_29, %c0_30] : memref<64x256xbf16, #tpu.memory_space<vmem>>, vector<64x256xbf16>
    %cst_31 = arith.constant dense<0.000000e+00> : vector<64x256xf32>
    %27 = tpu.matmul %25, %26, %cst_31 {dimension_numbers = #tpu.dot_dimension_numbers<[1], [0], [0], [1], [0, 0, 1, 1], [], []>} : vector<64x64xbf16>, vector<64x256xbf16>, vector<64x256xf32> -> vector<64x256xf32>
    %c0_32 = arith.constant 0 : index
    %c0_33 = arith.constant 0 : index
    %28 = vector.load %arg8[%c0_32, %c0_33] : memref<1x256xf32, #tpu.memory_space<vmem>>, vector<1x256xf32>
    %29 = vector.broadcast %28 : vector<1x256xf32> to vector<64x256xf32>
    %30 = arith.addf %27, %29 : vector<64x256xf32>
    %c0_34 = arith.constant 0 : index
    %c0_35 = arith.constant 0 : index
    %31 = vector.load %arg20[%c0_34, %c0_35] : memref<64x256xf32, #tpu.memory_space<vmem>>, vector<64x256xf32>
    tpu.vector_store %arg20[%c0_34, %c0_35], %30 {strides = array<i32>} : memref<64x256xf32, #tpu.memory_space<vmem>>, vector<64x256xf32>,
    %c0_36 = arith.constant 0 : index
    %c0_37 = arith.constant 0 : index
    %32 = vector.load %arg9[%c0_36, %c0_37] : memref<32x256xbf16, #tpu.memory_space<vmem>>, vector<32x256xbf16>
    %cst_38 = arith.constant 0.000000e+00 : f32
    %33 = vector.broadcast %cst_38 : f32 to vector<16x32xf32>
    %c0_i32_39 = arith.constant 0 : i32
    %c8_i32_40 = arith.constant 8 : i32
    %34 = arith.addi %c0_i32_39, %c8_i32_40 : i32
    %c1_i32_41 = arith.constant 1 : i32
    %35:2 = scf.for %arg21 = %c0_i32_39 to %34 step %c1_i32_41 iter_args(%arg22 = %33, %arg23 = %33) -> (vector<16x32xf32>, vector<16x32xf32>)  : i32 {
      %c8_i32_75 = arith.constant 8 : i32
      %77 = arith.muli %arg21, %c8_i32_75 : i32
      %78 = tpu.assume_multiple %77, 8 : i32
      %c7_i32 = arith.constant 7 : i32
      %79 = arith.subi %c7_i32, %arg21 : i32
      %c8_i32_76 = arith.constant 8 : i32
      %80 = arith.muli %79, %c8_i32_76 : i32
      %81 = tpu.assume_multiple %80, 8 : i32
      %82 = arith.truncf %arg22 : vector<16x32xf32> to vector<16x32xbf16>
      %cst_77 = arith.constant dense<0.000000e+00> : vector<16x256xf32>
      %83 = tpu.matmul %82, %32, %cst_77 {dimension_numbers = #tpu.dot_dimension_numbers<[1], [0], [0], [1], [0, 0, 1, 1], [], []>} : vector<16x32xbf16>, vector<32x256xbf16>, vector<16x256xf32> -> vector<16x256xf32>
      %84 = arith.index_cast %78 : i32 to index
      %c0_78 = arith.constant 0 : index
      %85 = vector.load %arg20[%84, %c0_78] : memref<64x256xf32, #tpu.memory_space<vmem>>, vector<8x128xf32>
      %86 = vector.extract_strided_slice %83 {offsets = [0, 0], sizes = [8, 128], strides = [1, 1]} : vector<16x256xf32> to vector<8x128xf32>
      %87 = arith.addf %85, %86 : vector<8x128xf32>
      %88 = arith.index_cast %81 : i32 to index
      %c128 = arith.constant 128 : index
      %89 = vector.load %arg20[%88, %c128] : memref<64x256xf32, #tpu.memory_space<vmem>>, vector<8x128xf32>
      %90 = vector.extract_strided_slice %83 {offsets = [8, 128], sizes = [8, 128], strides = [1, 1]} : vector<16x256xf32> to vector<8x128xf32>
      %91 = arith.addf %89, %90 : vector<8x128xf32>
      %92 = tpu.concatenate %87, %91 in 0 : vector<8x128xf32>, vector<8x128xf32> -> vector<16x128xf32>
      %93 = arith.negf %92 : vector<16x128xf32>
      %94 = math.exp %93 : vector<16x128xf32>
      %cst_79 = arith.constant 1.000000e+00 : f32
      %95 = vector.broadcast %cst_79 : f32 to vector<16x128xf32>
      %96 = arith.addf %95, %94 : vector<16x128xf32>
      %97 = arith.divf %95, %96 : vector<16x128xf32>
      %98 = vector.extract_strided_slice %92 {offsets = [0, 64], sizes = [16, 32], strides = [1, 1]} : vector<16x128xf32> to vector<16x32xf32>
      %99 = math.tanh %98 : vector<16x32xf32>
      %100 = vector.extract_strided_slice %97 {offsets = [0, 32], sizes = [16, 32], strides = [1, 1]} : vector<16x128xf32> to vector<16x32xf32>
      %101 = arith.mulf %100, %arg23 : vector<16x32xf32>
      %102 = vector.extract_strided_slice %97 {offsets = [0, 0], sizes = [16, 32], strides = [1, 1]} : vector<16x128xf32> to vector<16x32xf32>
      %103 = arith.mulf %102, %99 : vector<16x32xf32>
      %104 = arith.addf %101, %103 : vector<16x32xf32>
      %105 = vector.extract_strided_slice %97 {offsets = [0, 96], sizes = [16, 32], strides = [1, 1]} : vector<16x128xf32> to vector<16x32xf32>
      %106 = math.tanh %104 : vector<16x32xf32>
      %107 = arith.mulf %105, %106 : vector<16x32xf32>
      %108 = vector.extract_strided_slice %107 {offsets = [0, 0], sizes = [8, 32], strides = [1, 1]} : vector<16x32xf32> to vector<8x32xf32>
      %109 = arith.index_cast %78 : i32 to index
      %c0_80 = arith.constant 0 : index
      %110 = vector.load %arg18[%109, %c0_80] : memref<64x64xf32, #tpu.memory_space<vmem>>, vector<8x32xf32>
      tpu.vector_store %arg18[%109, %c0_80], %108 {strides = array<i32>} : memref<64x64xf32, #tpu.memory_space<vmem>>, vector<8x32xf32>,
      %111 = vector.extract_strided_slice %107 {offsets = [8, 0], sizes = [8, 32], strides = [1, 1]} : vector<16x32xf32> to vector<8x32xf32>
      %112 = arith.index_cast %81 : i32 to index
      %c32 = arith.constant 32 : index
      %113 = vector.load %arg18[%112, %c32] : memref<64x64xf32, #tpu.memory_space<vmem>>, vector<8x32xf32>
      tpu.vector_store %arg18[%112, %c32], %111 {strides = array<i32>} : memref<64x64xf32, #tpu.memory_space<vmem>>, vector<8x32xf32>,
      scf.yield %107, %104 : vector<16x32xf32>, vector<16x32xf32>
    }
    %c8_i32_42 = arith.constant 8 : i32
    %c0_43 = arith.constant 0 : index
    %c0_44 = arith.constant 0 : index
    %36 = vector.load %arg18[%c0_43, %c0_44] : memref<64x64xf32, #tpu.memory_space<vmem>>, vector<64x64xf32>
    %37 = arith.truncf %36 : vector<64x64xf32> to vector<64x64xbf16>
    %c0_45 = arith.constant 0 : index
    %c0_46 = arith.constant 0 : index
    %38 = vector.load %arg10[%c0_45, %c0_46] : memref<64x256xbf16, #tpu.memory_space<vmem>>, vector<64x256xbf16>
    %cst_47 = arith.constant dense<0.000000e+00> : vector<64x256xf32>
    %39 = tpu.matmul %37, %38, %cst_47 {dimension_numbers = #tpu.dot_dimension_numbers<[1], [0], [0], [1], [0, 0, 1, 1], [], []>} : vector<64x64xbf16>, vector<64x256xbf16>, vector<64x256xf32> -> vector<64x256xf32>
    %c0_48 = arith.constant 0 : index
    %c0_49 = arith.constant 0 : index
    %40 = vector.load %arg11[%c0_48, %c0_49] : memref<1x256xf32, #tpu.memory_space<vmem>>, vector<1x256xf32>
    %41 = vector.broadcast %40 : vector<1x256xf32> to vector<64x256xf32>
    %42 = arith.addf %39, %41 : vector<64x256xf32>
    %c0_50 = arith.constant 0 : index
    %c0_51 = arith.constant 0 : index
    %43 = vector.load %arg20[%c0_50, %c0_51] : memref<64x256xf32, #tpu.memory_space<vmem>>, vector<64x256xf32>
    tpu.vector_store %arg20[%c0_50, %c0_51], %42 {strides = array<i32>} : memref<64x256xf32, #tpu.memory_space<vmem>>, vector<64x256xf32>,
    %c0_52 = arith.constant 0 : index
    %c0_53 = arith.constant 0 : index
    %44 = vector.load %arg12[%c0_52, %c0_53] : memref<32x256xbf16, #tpu.memory_space<vmem>>, vector<32x256xbf16>
    %cst_54 = arith.constant 0.000000e+00 : f32
    %45 = vector.broadcast %cst_54 : f32 to vector<16x32xf32>
    %c0_i32_55 = arith.constant 0 : i32
    %c8_i32_56 = arith.constant 8 : i32
    %46 = arith.addi %c0_i32_55, %c8_i32_56 : i32
    %c1_i32_57 = arith.constant 1 : i32
    %47:2 = scf.for %arg21 = %c0_i32_55 to %46 step %c1_i32_57 iter_args(%arg22 = %45, %arg23 = %45) -> (vector<16x32xf32>, vector<16x32xf32>)  : i32 {
      %c8_i32_75 = arith.constant 8 : i32
      %77 = arith.muli %arg21, %c8_i32_75 : i32
      %78 = tpu.assume_multiple %77, 8 : i32
      %c7_i32 = arith.constant 7 : i32
      %79 = arith.subi %c7_i32, %arg21 : i32
      %c8_i32_76 = arith.constant 8 : i32
      %80 = arith.muli %79, %c8_i32_76 : i32
      %81 = tpu.assume_multiple %80, 8 : i32
      %82 = arith.truncf %arg22 : vector<16x32xf32> to vector<16x32xbf16>
      %cst_77 = arith.constant dense<0.000000e+00> : vector<16x256xf32>
      %83 = tpu.matmul %82, %44, %cst_77 {dimension_numbers = #tpu.dot_dimension_numbers<[1], [0], [0], [1], [0, 0, 1, 1], [], []>} : vector<16x32xbf16>, vector<32x256xbf16>, vector<16x256xf32> -> vector<16x256xf32>
      %84 = arith.index_cast %78 : i32 to index
      %c0_78 = arith.constant 0 : index
      %85 = vector.load %arg20[%84, %c0_78] : memref<64x256xf32, #tpu.memory_space<vmem>>, vector<8x128xf32>
      %86 = vector.extract_strided_slice %83 {offsets = [0, 0], sizes = [8, 128], strides = [1, 1]} : vector<16x256xf32> to vector<8x128xf32>
      %87 = arith.addf %85, %86 : vector<8x128xf32>
      %88 = arith.index_cast %81 : i32 to index
      %c128 = arith.constant 128 : index
      %89 = vector.load %arg20[%88, %c128] : memref<64x256xf32, #tpu.memory_space<vmem>>, vector<8x128xf32>
      %90 = vector.extract_strided_slice %83 {offsets = [8, 128], sizes = [8, 128], strides = [1, 1]} : vector<16x256xf32> to vector<8x128xf32>
      %91 = arith.addf %89, %90 : vector<8x128xf32>
      %92 = tpu.concatenate %87, %91 in 0 : vector<8x128xf32>, vector<8x128xf32> -> vector<16x128xf32>
      %93 = arith.negf %92 : vector<16x128xf32>
      %94 = math.exp %93 : vector<16x128xf32>
      %cst_79 = arith.constant 1.000000e+00 : f32
      %95 = vector.broadcast %cst_79 : f32 to vector<16x128xf32>
      %96 = arith.addf %95, %94 : vector<16x128xf32>
      %97 = arith.divf %95, %96 : vector<16x128xf32>
      %98 = vector.extract_strided_slice %92 {offsets = [0, 64], sizes = [16, 32], strides = [1, 1]} : vector<16x128xf32> to vector<16x32xf32>
      %99 = math.tanh %98 : vector<16x32xf32>
      %100 = vector.extract_strided_slice %97 {offsets = [0, 32], sizes = [16, 32], strides = [1, 1]} : vector<16x128xf32> to vector<16x32xf32>
      %101 = arith.mulf %100, %arg23 : vector<16x32xf32>
      %102 = vector.extract_strided_slice %97 {offsets = [0, 0], sizes = [16, 32], strides = [1, 1]} : vector<16x128xf32> to vector<16x32xf32>
      %103 = arith.mulf %102, %99 : vector<16x32xf32>
      %104 = arith.addf %101, %103 : vector<16x32xf32>
      %105 = vector.extract_strided_slice %97 {offsets = [0, 96], sizes = [16, 32], strides = [1, 1]} : vector<16x128xf32> to vector<16x32xf32>
      %106 = math.tanh %104 : vector<16x32xf32>
      %107 = arith.mulf %105, %106 : vector<16x32xf32>
      %108 = vector.extract_strided_slice %107 {offsets = [0, 0], sizes = [8, 32], strides = [1, 1]} : vector<16x32xf32> to vector<8x32xf32>
      %109 = arith.index_cast %78 : i32 to index
      %c0_80 = arith.constant 0 : index
      %110 = vector.load %arg19[%109, %c0_80] : memref<64x64xf32, #tpu.memory_space<vmem>>, vector<8x32xf32>
      tpu.vector_store %arg19[%109, %c0_80], %108 {strides = array<i32>} : memref<64x64xf32, #tpu.memory_space<vmem>>, vector<8x32xf32>,
      %111 = vector.extract_strided_slice %107 {offsets = [8, 0], sizes = [8, 32], strides = [1, 1]} : vector<16x32xf32> to vector<8x32xf32>
      %112 = arith.index_cast %81 : i32 to index
      %c32 = arith.constant 32 : index
      %113 = vector.load %arg19[%112, %c32] : memref<64x64xf32, #tpu.memory_space<vmem>>, vector<8x32xf32>
      tpu.vector_store %arg19[%112, %c32], %111 {strides = array<i32>} : memref<64x64xf32, #tpu.memory_space<vmem>>, vector<8x32xf32>,
      scf.yield %107, %104 : vector<16x32xf32>, vector<16x32xf32>
    }
    %c8_i32_58 = arith.constant 8 : i32
    %c56 = arith.constant 56 : index
    %c0_59 = arith.constant 0 : index
    %48 = vector.load %arg19[%c56, %c0_59] : memref<64x64xf32, #tpu.memory_space<vmem>>, vector<8x64xf32>
    %cst_60 = arith.constant 0.000000e+00 : f32
    %49 = vector.broadcast %cst_60 : f32 to vector<8x64xf32>
    %50 = arith.maximumf %48, %49 : vector<8x64xf32>
    %c0_61 = arith.constant 0 : index
    %c0_62 = arith.constant 0 : index
    %51 = vector.load %arg13[%c0_61, %c0_62] : memref<1x64xf32, #tpu.memory_space<vmem>>, vector<1x64xf32>
    %cst_63 = arith.constant 0.999994993 : f32
    %52 = vector.broadcast %cst_63 : f32 to vector<1x64xf32>
    %53 = arith.mulf %51, %52 : vector<1x64xf32>
    %54 = vector.broadcast %53 : vector<1x64xf32> to vector<8x64xf32>
    %55 = arith.mulf %50, %54 : vector<8x64xf32>
    %c0_64 = arith.constant 0 : index
    %c0_65 = arith.constant 0 : index
    %56 = vector.load %arg14[%c0_64, %c0_65] : memref<1x64xf32, #tpu.memory_space<vmem>>, vector<1x64xf32>
    %57 = vector.broadcast %56 : vector<1x64xf32> to vector<8x64xf32>
    %58 = arith.addf %55, %57 : vector<8x64xf32>
    %59 = arith.truncf %58 : vector<8x64xf32> to vector<8x64xbf16>
    %c0_66 = arith.constant 0 : index
    %c0_67 = arith.constant 0 : index
    %60 = vector.load %arg15[%c0_66, %c0_67] : memref<64x128xbf16, #tpu.memory_space<vmem>>, vector<64x128xbf16>
    %cst_68 = arith.constant dense<0.000000e+00> : vector<8x128xf32>
    %61 = tpu.matmul %59, %60, %cst_68 {dimension_numbers = #tpu.dot_dimension_numbers<[1], [0], [0], [1], [0, 0, 1, 1], [], []>} : vector<8x64xbf16>, vector<64x128xbf16>, vector<8x128xf32> -> vector<8x128xf32>
    %c0_69 = arith.constant 0 : index
    %c0_70 = arith.constant 0 : index
    %62 = vector.load %arg16[%c0_69, %c0_70] : memref<1x128xf32, #tpu.memory_space<vmem>>, vector<1x128xf32>
    %63 = vector.broadcast %62 : vector<1x128xf32> to vector<8x128xf32>
    %64 = arith.addf %61, %63 : vector<8x128xf32>
    %cst_71 = arith.constant dense<0xFF800000> : vector<8xf32>
    %65 = vector.multi_reduction <maximumf>, %64, %cst_71 [1] : vector<8x128xf32> to vector<8xf32>
    %66 = vector.shape_cast %65 : vector<8xf32> to vector<8x1xf32>
    %67 = vector.broadcast %66 : vector<8x1xf32> to vector<8x128xf32>
    %68 = arith.subf %64, %67 : vector<8x128xf32>
    %69 = math.exp %68 : vector<8x128xf32>
    %cst_72 = arith.constant dense<0.000000e+00> : vector<8xf32>
    %70 = vector.multi_reduction <add>, %69, %cst_72 [1] : vector<8x128xf32> to vector<8xf32>
    %71 = vector.shape_cast %70 : vector<8xf32> to vector<8x1xf32>
    %72 = math.log %71 : vector<8x1xf32>
    %73 = arith.addf %66, %72 : vector<8x1xf32>
    %74 = vector.broadcast %73 : vector<8x1xf32> to vector<8x128xf32>
    %75 = arith.subf %64, %74 : vector<8x128xf32>
    %c0_73 = arith.constant 0 : index
    %c0_74 = arith.constant 0 : index
    %76 = vector.load %arg17[%c0_73, %c0_74] : memref<8x128xf32, #tpu.memory_space<vmem>>, vector<8x128xf32>
    tpu.vector_store %arg17[%c0_73, %c0_74], %75 {strides = array<i32>} : memref<8x128xf32, #tpu.memory_space<vmem>>, vector<8x128xf32>,
    return
  }
}

</mosaic_0001>

<llo_original>
// kernel: sequence_classifier_forward.1
$region0: #{sequence_classifier_forward.1}
  #allocation0 [shape = 'u32[]', space=smem, size = 0x4, offset = 0x4, fixed_abs, tag = 'smem constant byte address 0x4 - core index']
  #allocation1 [shape = 'u32[144,128]{1,0:T(1,128)}', space=vmem, size = 0x12000, scoped, tag = 'internal scratch']
  #allocation2 [shape = 'f32[64,64]{1,0:T(8,128)}', space=vmem, size = 0x8000, scoped, tag = 'scratch operand']
  #allocation3 [shape = 'f32[64,64]{1,0:T(8,128)}', space=vmem, size = 0x8000, scoped, tag = 'scratch operand']
  #allocation4 [shape = 'f32[64,256]{1,0:T(8,128)}', space=vmem, size = 0x10000, scoped, tag = 'scratch operand']
  %s0 = inlined_call_operand.vmem [shape: f32[64,16], index: 0, kind: input, shape index: {}]
  %s1 = inlined_call_operand.vmem [shape: bf16[16,256], index: 1, kind: input, shape index: {}]
  %s2 = inlined_call_operand.vmem [shape: f32[1,256], index: 2, kind: input, shape index: {}]
  %s3 = inlined_call_operand.vmem [shape: bf16[32,256], index: 3, kind: input, shape index: {}]
  %s4 = inlined_call_operand.vmem [shape: bf16[64,256], index: 4, kind: input, shape index: {}]
  %s5 = inlined_call_operand.vmem [shape: f32[1,256], index: 5, kind: input, shape index: {}]
  %s6 = inlined_call_operand.vmem [shape: bf16[32,256], index: 6, kind: input, shape index: {}]
  %s7 = inlined_call_operand.vmem [shape: bf16[64,256], index: 7, kind: input, shape index: {}]
  %s8 = inlined_call_operand.vmem [shape: f32[1,256], index: 8, kind: input, shape index: {}]
  %s9 = inlined_call_operand.vmem [shape: bf16[32,256], index: 9, kind: input, shape index: {}]
  %s10 = inlined_call_operand.vmem [shape: bf16[64,256], index: 10, kind: input, shape index: {}]
  %s11 = inlined_call_operand.vmem [shape: f32[1,256], index: 11, kind: input, shape index: {}]
  %s12 = inlined_call_operand.vmem [shape: bf16[32,256], index: 12, kind: input, shape index: {}]
  %s13 = inlined_call_operand.vmem [shape: f32[1,64], index: 13, kind: input, shape index: {}]
  %s14 = inlined_call_operand.vmem [shape: f32[1,64], index: 14, kind: input, shape index: {}]
  %s15 = inlined_call_operand.vmem [shape: bf16[64,128], index: 15, kind: input, shape index: {}]
  %s16 = inlined_call_operand.vmem [shape: f32[1,128], index: 16, kind: input, shape index: {}]
  %s17 = inlined_call_operand.vmem [shape: f32[8,128], index: 17, kind: output, shape index: {}]
  %s18 = sld [smem:[#allocation0]]
  $region106: #{sequence_classifier_forward.1} parent=0
    _
  %s20 = ssub.s32 1, %s18
  %s21 = scalar_select 0, %s20, %s18
  // Predicated region
  $region2: #{sequence_classifier_forward.1} parent=0 // pred_check
    _
  $region3: #{sequence_classifier_forward.1} parent=0 // pred_check_branch
    %23 = sbr.rel (0) target = $region5
  $region4: #{sequence_classifier_forward.1} parent=0 // pred_region
    _
  $region5: #{sequence_classifier_forward.1} parent=0 // pred_fallthru
    _
  // Predicated region
  $region6: #{sequence_classifier_forward.1} parent=0 // pred_check
    _
  $region7: #{sequence_classifier_forward.1} parent=0 // pred_check_branch
    %25 = sbr.rel (0) target = $region9
  $region8: #{sequence_classifier_forward.1} parent=0 // pred_region
    _
  $region9: #{sequence_classifier_forward.1} parent=0 // pred_fallthru
    _
  // Predicated region
  $region10: #{sequence_classifier_forward.1} parent=0 // pred_check
    _
  $region11: #{sequence_classifier_forward.1} parent=0 // pred_check_branch
    %27 = sbr.rel (0) target = $region13
  $region12: #{sequence_classifier_forward.1} parent=0 // pred_region
    _
  $region13: #{sequence_classifier_forward.1} parent=0 // pred_fallthru
    _
  // Predicated region
  $region14: #{sequence_classifier_forward.1} parent=0 // pred_check
    _
  $region15: #{sequence_classifier_forward.1} parent=0 // pred_check_branch
    %29 = sbr.rel (0) target = $region17
  $region16: #{sequence_classifier_forward.1} parent=0 // pred_region
    _
  $region17: #{sequence_classifier_forward.1} parent=0 // pred_fallthru
    _
  // Predicated region
  $region18: #{sequence_classifier_forward.1} parent=0 // pred_check
    _
  $region19: #{sequence_classifier_forward.1} parent=0 // pred_check_branch
    %31 = sbr.rel (0) target = $region21
  $region20: #{sequence_classifier_forward.1} parent=0 // pred_region
    _
  $region21: #{sequence_classifier_forward.1} parent=0 // pred_fallthru
    _
  // Predicated region
  $region22: #{sequence_classifier_forward.1} parent=0 // pred_check
    _
  $region23: #{sequence_classifier_forward.1} parent=0 // pred_check_branch
    %33 = sbr.rel (0) target = $region25
  $region24: #{sequence_classifier_forward.1} parent=0 // pred_region
    _
  $region25: #{sequence_classifier_forward.1} parent=0 // pred_fallthru
    _
  // Predicated region
  $region26: #{sequence_classifier_forward.1} parent=0 // pred_check
    _
  $region27: #{sequence_classifier_forward.1} parent=0 // pred_check_branch
    %35 = sbr.rel (0) target = $region29
  $region28: #{sequence_classifier_forward.1} parent=0 // pred_region
    _
  $region29: #{sequence_classifier_forward.1} parent=0 // pred_fallthru
    _
  // Predicated region
  $region30: #{sequence_classifier_forward.1} parent=0 // pred_check
    _
  $region31: #{sequence_classifier_forward.1} parent=0 // pred_check_branch
    %37 = sbr.rel (0) target = $region33
  $region32: #{sequence_classifier_forward.1} parent=0 // pred_region
    _
  $region33: #{sequence_classifier_forward.1} parent=0 // pred_fallthru
    _
  // Predicated region
  $region34: #{sequence_classifier_forward.1} parent=0 // pred_check
    _
  $region35: #{sequence_classifier_forward.1} parent=0 // pred_check_branch
    %39 = sbr.rel (0) target = $region37
  $region36: #{sequence_classifier_forward.1} parent=0 // pred_region
    _
  $region37: #{sequence_classifier_forward.1} parent=0 // pred_fallthru
    _
  // Predicated region
  $region38: #{sequence_classifier_forward.1} parent=0 // pred_check
    _
  $region39: #{sequence_classifier_forward.1} parent=0 // pred_check_branch
    %41 = sbr.rel (0) target = $region41
  $region40: #{sequence_classifier_forward.1} parent=0 // pred_region
    _
  $region41: #{sequence_classifier_forward.1} parent=0 // pred_fallthru
    _
  // Predicated region
  $region42: #{sequence_classifier_forward.1} parent=0 // pred_check
    _
  $region43: #{sequence_classifier_forward.1} parent=0 // pred_check_branch
    %43 = sbr.rel (0) target = $region45
  $region44: #{sequence_classifier_forward.1} parent=0 // pred_region
    _
  $region45: #{sequence_classifier_forward.1} parent=0 // pred_fallthru
    _
  // Predicated region
  $region46: #{sequence_classifier_forward.1} parent=0 // pred_check
    _
  $region47: #{sequence_classifier_forward.1} parent=0 // pred_check_branch
    %45 = sbr.rel (0) target = $region49
  $region48: #{sequence_classifier_forward.1} parent=0 // pred_region
    _
  $region49: #{sequence_classifier_forward.1} parent=0 // pred_fallthru
    _
  // Predicated region
  $region50: #{sequence_classifier_forward.1} parent=0 // pred_check
    _
  $region51: #{sequence_classifier_forward.1} parent=0 // pred_check_branch
    %47 = sbr.rel (0) target = $region53
  $region52: #{sequence_classifier_forward.1} parent=0 // pred_region
    _
  $region53: #{sequence_classifier_forward.1} parent=0 // pred_fallthru
    _
  // Predicated region
  $region54: #{sequence_classifier_forward.1} parent=0 // pred_check
    _
  $region55: #{sequence_classifier_forward.1} parent=0 // pred_check_branch
    %49 = sbr.rel (0) target = $region57
  $region56: #{sequence_classifier_forward.1} parent=0 // pred_region
    _
  $region57: #{sequence_classifier_forward.1} parent=0 // pred_fallthru
    _
  // Predicated region
  $region58: #{sequence_classifier_forward.1} parent=0 // pred_check
    _
  $region59: #{sequence_classifier_forward.1} parent=0 // pred_check_branch
    %51 = sbr.rel (0) target = $region61
  $region60: #{sequence_classifier_forward.1} parent=0 // pred_region
    _
  $region61: #{sequence_classifier_forward.1} parent=0 // pred_fallthru
    _
  // Predicated region
  $region62: #{sequence_classifier_forward.1} parent=0 // pred_check
    _
  $region63: #{sequence_classifier_forward.1} parent=0 // pred_check_branch
    %53 = sbr.rel (0) target = $region65
  $region64: #{sequence_classifier_forward.1} parent=0 // pred_region
    _
  $region65: #{sequence_classifier_forward.1} parent=0 // pred_fallthru
    _
  // Predicated region
  $region66: #{sequence_classifier_forward.1} parent=0 // pred_check
    _
  $region67: #{sequence_classifier_forward.1} parent=0 // pred_check_branch
    %55 = sbr.rel (0) target = $region69
  $region68: #{sequence_classifier_forward.1} parent=0 // pred_region
    _
  $region69: #{sequence_classifier_forward.1} parent=0 // pred_fallthru
    _
  %v57 = vld [vmem:[%s0] sm:$0xff]
  %v58 = vld [vmem:[%s0 + $0x8] sm:$0xff]
  %v59 = vld [vmem:[%s0 + $0x10] sm:$0xff]
  %v60 = vld [vmem:[%s0 + $0x18] sm:$0xff]
  %v61 = vld [vmem:[%s0 + $0x20] sm:$0xff]
  %v62 = vld [vmem:[%s0 + $0x28] sm:$0xff]
  %v63 = vld [vmem:[%s0 + $0x30] sm:$0xff]
  %v64 = vld [vmem:[%s0 + $0x38] sm:$0xff]
  %v65 = vpack.c.bf16 %v58, %v57
  %v66 = vpack.c.bf16 %v60, %v59
  %v67 = vpack.c.bf16 %v62, %v61
  %v68 = vpack.c.bf16 %v64, %v63
  %v69 = vld [vmem:[%s1] sm:$0xff]
  %v70 = vld [vmem:[%s1 + $0x8] sm:$0xff]
  %v71 = vld [vmem:[%s2] sm:$0x3]
  %v73 = vlaneseq
  %v74 = vshrl.u32 %v73, 7
  %v75 = vsub.s32 0, %v74
  %v76 = vrot.slane %v71, %v75
  %v77 = vlaneseq
  %v78 = vshrl.u32 %v77, 7
  %v79 = vsub.s32 1, %v78
  %v80 = vrot.slane %v71, %v79
  %v85 = vunpack.c.l.b16 %v69
  %v86 = vunpack.c.h.b16 %v69
  %v87 = vunpack.c.l.b16 %v70
  %v88 = vunpack.c.h.b16 %v70
  %v89 = vpack.c.b16 %v87, %v85
  %v90 = vpack.c.b16 %v88, %v86
  %vm93 = vcmask 130048
  %v95 = vsel %vm93, %v65, 0
  %v98 = vsel %vm93, %v66, 0
  %v101 = vsel %vm93, %v67, 0
  %v104 = vsel %vm93, %v68, 0
  %106 = vmatprep.subr.bf16.mxu0 %v90
  %107 = vmatpush1.bf16.msra.mxu0 %v89
  %108 = vmatprep.subr.bf16.mxu0 0
  %109 = vmatpush1.bf16.msra.mxu0 0
  %110 = vmatprep.subr.bf16.mxu0 0
  %111 = vmatpush1.bf16.msra.mxu0 0
  %112 = vmatprep.subr.bf16.mxu0 0
  %113 = vmatpush1.bf16.msra.mxu0 0
  %114 = vmatprep.subr.bf16.mxu0 0
  %115 = vmatpush1.bf16.msra.mxu0 0
  %116 = vmatprep.subr.bf16.mxu0 0
  %117 = vmatpush1.bf16.msra.mxu0 0
  %118 = vmatprep.subr.bf16.mxu0 0
  %119 = vmatpush1.bf16.msra.mxu0 0
  %120 = vmatprep.subr.bf16.mxu0 0
  %121 = vmatpush1.bf16.msra.mxu0 0
  %122 = vmatprep.subr.bf16.mxu0 0
  %123 = vmatpush1.bf16.msra.mxu0 0
  %124 = vmatprep.subr.bf16.mxu0 0
  %125 = vmatpush1.bf16.msra.mxu0 0
  %126 = vmatprep.subr.bf16.mxu0 0
  %127 = vmatpush1.bf16.msra.mxu0 0
  %128 = vmatprep.subr.bf16.mxu0 0
  %129 = vmatpush1.bf16.msra.mxu0 0
  %130 = vmatprep.subr.bf16.mxu0 0
  %131 = vmatpush1.bf16.msra.mxu0 0
  %132 = vmatprep.subr.bf16.mxu0 0
  %133 = vmatpush1.bf16.msra.mxu0 0
  %134 = vmatprep.subr.bf16.mxu0 0
  %135 = vmatpush1.bf16.msra.mxu0 0
  %136 = vmatprep.subr.bf16.mxu0 0
  %137 = vmatpush1.bf16.msra.mxu0 0
  %138 = vmatprep.mubr.bf16.mxu0 0
  %139 = vmatmul.mubr.bf16.gmra.mrb[0].mxu0 %v95
  %v140 = vpop.f32.mrb[0].mxu0
  %v141 = vadd.f32 %v76, %v140
  %v142 = vpop.f32.mrb[0].mxu0
  %v143 = vadd.f32 %v80, %v142
  %v144 = vpop.f32.mrb[0].mxu0
  %v145 = vadd.f32 %v76, %v144
  %v146 = vpop.f32.mrb[0].mxu0
  %v147 = vadd.f32 %v80, %v146
  %148 = vmatprep.mubr.bf16.mxu0 0
  %149 = vmatmul.mubr.bf16.gmra.mrb[0].mxu0 %v98
  %v150 = vpop.f32.mrb[0].mxu0
  %v151 = vadd.f32 %v76, %v150
  %v152 = vpop.f32.mrb[0].mxu0
  %v153 = vadd.f32 %v80, %v152
  %v154 = vpop.f32.mrb[0].mxu0
  %v155 = vadd.f32 %v76, %v154
  %v156 = vpop.f32.mrb[0].mxu0
  %v157 = vadd.f32 %v80, %v156
  %158 = vmatprep.mubr.bf16.mxu0 0
  %159 = vmatmul.mubr.bf16.gmra.mrb[0].mxu0 %v101
  %v160 = vpop.f32.mrb[0].mxu0
  %v161 = vadd.f32 %v76, %v160
  %v162 = vpop.f32.mrb[0].mxu0
  %v163 = vadd.f32 %v80, %v162
  %v164 = vpop.f32.mrb[0].mxu0
  %v165 = vadd.f32 %v76, %v164
  %v166 = vpop.f32.mrb[0].mxu0
  %v167 = vadd.f32 %v80, %v166
  %168 = vmatprep.mubr.bf16.mxu0 0
  %169 = vmatmul.mubr.bf16.gmra.mrb[0].mxu0 %v104
  %v170 = vpop.f32.mrb[0].mxu0
  %v171 = vadd.f32 %v76, %v170
  %v172 = vpop.f32.mrb[0].mxu0
  %v173 = vadd.f32 %v80, %v172
  %v174 = vpop.f32.mrb[0].mxu0
  %v175 = vadd.f32 %v76, %v174
  %v176 = vpop.f32.mrb[0].mxu0
  %v177 = vadd.f32 %v80, %v176
  %178 = vdwg.mxu0
  %179 = vst [vmem:[#allocation4] sm:$0xff] %v141
  %180 = vst [vmem:[#allocation4 + $0x8] sm:$0xff] %v143
  %181 = vst [vmem:[#allocation4 + $0x10] sm:$0xff] %v145
  %182 = vst [vmem:[#allocation4 + $0x18] sm:$0xff] %v147
  %183 = vst [vmem:[#allocation4 + $0x20] sm:$0xff] %v151
  %184 = vst [vmem:[#allocation4 + $0x28] sm:$0xff] %v153
  %185 = vst [vmem:[#allocation4 + $0x30] sm:$0xff] %v155
  %186 = vst [vmem:[#allocation4 + $0x38] sm:$0xff] %v157
  %187 = vst [vmem:[#allocation4 + $0x40] sm:$0xff] %v161
  %188 = vst [vmem:[#allocation4 + $0x48] sm:$0xff] %v163
  %189 = vst [vmem:[#allocation4 + $0x50] sm:$0xff] %v165
  %190 = vst [vmem:[#allocation4 + $0x58] sm:$0xff] %v167
  %191 = vst [vmem:[#allocation4 + $0x60] sm:$0xff] %v171
  %192 = vst [vmem:[#allocation4 + $0x68] sm:$0xff] %v173
  %193 = vst [vmem:[#allocation4 + $0x70] sm:$0xff] %v175
  %194 = vst [vmem:[#allocation4 + $0x78] sm:$0xff] %v177
  %v195 = vld [vmem:[%s3] sm:$0xff]
  %v196 = vld [vmem:[%s3 + $0x8] sm:$0xff]
  %v197 = vld [vmem:[%s3 + $0x10] sm:$0xff]
  %v198 = vld [vmem:[%s3 + $0x18] sm:$0xff]
  loop: start=0, step=1, limit=8
  $region70: #{sequence_classifier_forward.1} parent=0 // loop_pre_header
    _
  $region71: #{sequence_classifier_forward.1} parent=0 // loop_header
    %s200 = sphi 0, %s204
    %p201 = scmp.ge.s32.totalorder %s200, 8
    %v205 = vphi 0.0, %v341
    %v206 = vphi 0.0, %v342
    %v207 = vphi 0.0, %v329
    %v208 = vphi 0.0, %v330
  $region72: #{sequence_classifier_forward.1} parent=0 // loop_header_branch
    %203 = sbr.rel (%p201) target = $region76
  $region73: #{sequence_classifier_forward.1} parent=0 // loop_body
    %s209 = smul.u32 %s200, 8
    %s210 = ssub.s32 7, %s200
    %s211 = smul.u32 %s210, 8
    %v212 = vpack.c.bf16 %v206, %v205
    %214 = vrot.lane.b32.xlu0 %v212, 32
    %v215 = vpop.permute.xlu0 %214
    %v220 = vunpack.c.l.b16 %v195
    %v221 = vunpack.c.h.b16 %v195
    %v222 = vunpack.c.l.b16 %v196
    %v223 = vunpack.c.h.b16 %v196
    %v224 = vunpack.c.l.b16 %v197
    %v225 = vunpack.c.h.b16 %v197
    %v226 = vunpack.c.l.b16 %v198
    %v227 = vunpack.c.h.b16 %v198
    %v228 = vpack.c.b16 %v222, %v220
    %v229 = vpack.c.b16 %v223, %v221
    %v230 = vpack.c.b16 %v226, %v224
    %v231 = vpack.c.b16 %v227, %v225
    %vm236 = vcmask 261120
    %v238 = vsel %vm236, %v215, 0
    %240 = vmatprep.subr.bf16.mxu0 %v229
    %241 = vmatpush1.bf16.msra.mxu0 %v228
    %242 = vmatprep.subr.bf16.mxu0 %v231
    %243 = vmatpush1.bf16.msra.mxu0 %v230
    %244 = vmatprep.subr.bf16.mxu0 0
    %245 = vmatpush1.bf16.msra.mxu0 0
    %246 = vmatprep.subr.bf16.mxu0 0
    %247 = vmatpush1.bf16.msra.mxu0 0
    %248 = vmatprep.subr.bf16.mxu0 0
    %249 = vmatpush1.bf16.msra.mxu0 0
    %250 = vmatprep.subr.bf16.mxu0 0
    %251 = vmatpush1.bf16.msra.mxu0 0
    %252 = vmatprep.subr.bf16.mxu0 0
    %253 = vmatpush1.bf16.msra.mxu0 0
    %254 = vmatprep.subr.bf16.mxu0 0
    %255 = vmatpush1.bf16.msra.mxu0 0
    %256 = vmatprep.subr.bf16.mxu0 0
    %257 = vmatpush1.bf16.msra.mxu0 0
    %258 = vmatprep.subr.bf16.mxu0 0
    %259 = vmatpush1.bf16.msra.mxu0 0
    %260 = vmatprep.subr.bf16.mxu0 0
    %261 = vmatpush1.bf16.msra.mxu0 0
    %262 = vmatprep.subr.bf16.mxu0 0
    %263 = vmatpush1.bf16.msra.mxu0 0
    %264 = vmatprep.subr.bf16.mxu0 0
    %265 = vmatpush1.bf16.msra.mxu0 0
    %266 = vmatprep.subr.bf16.mxu0 0
    %267 = vmatpush1.bf16.msra.mxu0 0
    %268 = vmatprep.subr.bf16.mxu0 0
    %269 = vmatpush1.bf16.msra.mxu0 0
    %270 = vmatprep.subr.bf16.mxu0 0
    %271 = vmatpush1.bf16.msra.mxu0 0
    %272 = vmatprep.mubr.bf16.mxu0 0
    %273 = vmatmul.mubr.bf16.gmra.mrb[0].mxu0 %v238
    %v274 = vpop.f32.mrb[0].mxu0
    %v275 = vadd.f32 0.0, %v274
    %v276 = vpop.f32.mrb[0].mxu0
    %v277 = vpop.f32.mrb[0].mxu0
    %v278 = vpop.f32.mrb[0].mxu0
    %v279 = vadd.f32 0.0, %v278
    %280 = vdwg.mxu0
    %s281 = sshra.s32 %s209, 3
    %s282 = sand.u32 %s209, 7
    %s283 = smul.u32 %s281, 2
    %s284 = smul.addr %s283, 8
    %s285 = scalar_lea.vmem [#allocation4], %s284
    %v286 = vld [vmem:[%s285] sm:$0xff]
    %v287 = vadd.f32 %v286, %v275
    %s288 = sshra.s32 %s211, 3
    %s289 = sand.u32 %s211, 7
    %s290 = smul.u32 %s288, 2
    %s291 = smul.addr %s290, 8
    %s292 = scalar_lea.vmem [#allocation4], %s291
    %v293 = vld [vmem:[%s292 + $0x8] sm:$0xff]
    %v294 = vadd.f32 %v293, %v279
    %v295 = vxor.u32 %v287, 2147483648
    %v296 = vxor.u32 %v294, 2147483648
    %v297 = vmul.f32 %v295, 1.442695
    %v298 = vpow.pop %v297
    %v299 = vmul.f32 %v296, 1.442695
    %v300 = vpow.pop %v299
    %v301 = vadd.f32 %v298, 1.0
    %v302 = vadd.f32 %v300, 1.0
    %v303 = vrcp.pop %v301
    %v304 = vmul.f32 1.0, %v303
    %v305 = vrcp.pop %v302
    %v306 = vmul.f32 1.0, %v305
    %v307 = vtanh.pop %v287
    %v308 = vtanh.pop %v294
    %v309 = vmul.f32 %v304, %v207
    %v310 = vmul.f32 %v306, %v208
    %313 = vrot.lane.b32.xlu0 %v307, 64
    %v314 = vpop.permute.xlu0 %313
    %315 = vrot.lane.b32.xlu0 %v308, 64
    %v316 = vpop.permute.xlu0 %315
    %v319 = vmul.f32 %v304, %v314
    %v320 = vmul.f32 %v306, %v316
    %323 = vrot.lane.b32.xlu0 %v319, 32
    %v324 = vpop.permute.xlu0 %323
    %325 = vrot.lane.b32.xlu0 %v320, 32
    %v326 = vpop.permute.xlu0 %325
    %v329 = vadd.f32 %v309, %v324
    %v330 = vadd.f32 %v310, %v326
    %v331 = vtanh.pop %v329
    %v332 = vtanh.pop %v330
    %335 = vrot.lane.b32.xlu0 %v331, 64
    %v336 = vpop.permute.xlu0 %335
    %337 = vrot.lane.b32.xlu0 %v332, 64
    %v338 = vpop.permute.xlu0 %337
    %v341 = vmul.f32 %v304, %v336
    %v342 = vmul.f32 %v306, %v338
    %344 = vrot.lane.b32.xlu0 %v341, 32
    %v345 = vpop.permute.xlu0 %344
    %s347 = scalar_lea.vmem [#allocation2], %s209
    %348 = vst.msk [vmem:[%s347] sm:$0xff] %vm236, %v345
    %350 = vrot.lane.b32.xlu0 %v342, 64
    %v351 = vpop.permute.xlu0 %350
    %s353 = scalar_lea.vmem [#allocation2], %s211
    %vm354 = vcmask 523520
    %355 = vst.msk [vmem:[%s353] sm:$0xff] %vm354, %v351
  $region74: #{sequence_classifier_forward.1} parent=0 // loop_footer
    %s204 = sadd.s32 1, %s200
  $region75: #{sequence_classifier_forward.1} parent=0 // loop_footer_branch
    %199 = sbr.rel target = $region71
  $region76: #{sequence_classifier_forward.1} parent=0 // loop_exit
    _
  %v356 = vld [vmem:[#allocation2] sm:$0xff]
  %v357 = vld [vmem:[#allocation2 + $0x8] sm:$0xff]
  %v358 = vld [vmem:[#allocation2 + $0x10] sm:$0xff]
  %v359 = vld [vmem:[#allocation2 + $0x18] sm:$0xff]
  %v360 = vld [vmem:[#allocation2 + $0x20] sm:$0xff]
  %v361 = vld [vmem:[#allocation2 + $0x28] sm:$0xff]
  %v362 = vld [vmem:[#allocation2 + $0x30] sm:$0xff]
  %v363 = vld [vmem:[#allocation2 + $0x38] sm:$0xff]
  %v364 = vpack.c.bf16 %v357, %v356
  %v365 = vpack.c.bf16 %v359, %v358
  %v366 = vpack.c.bf16 %v361, %v360
  %v367 = vpack.c.bf16 %v363, %v362
  %v368 = vld [vmem:[%s4] sm:$0xff]
  %v369 = vld [vmem:[%s4 + $0x8] sm:$0xff]
  %v370 = vld [vmem:[%s4 + $0x10] sm:$0xff]
  %v371 = vld [vmem:[%s4 + $0x18] sm:$0xff]
  %v372 = vld [vmem:[%s4 + $0x20] sm:$0xff]
  %v373 = vld [vmem:[%s4 + $0x28] sm:$0xff]
  %v374 = vld [vmem:[%s4 + $0x30] sm:$0xff]
  %v375 = vld [vmem:[%s4 + $0x38] sm:$0xff]
  %v376 = vld [vmem:[%s5] sm:$0x3]
  %v378 = vlaneseq
  %v379 = vshrl.u32 %v378, 7
  %v380 = vsub.s32 0, %v379
  %v381 = vrot.slane %v376, %v380
  %v382 = vlaneseq
  %v383 = vshrl.u32 %v382, 7
  %v384 = vsub.s32 1, %v383
  %v385 = vrot.slane %v376, %v384
  %v396 = vunpack.c.l.b16 %v368
  %v397 = vunpack.c.h.b16 %v368
  %v398 = vunpack.c.l.b16 %v369
  %v399 = vunpack.c.h.b16 %v369
  %v400 = vunpack.c.l.b16 %v370
  %v401 = vunpack.c.h.b16 %v370
  %v402 = vunpack.c.l.b16 %v371
  %v403 = vunpack.c.h.b16 %v371
  %v404 = vunpack.c.l.b16 %v372
  %v405 = vunpack.c.h.b16 %v372
  %v406 = vunpack.c.l.b16 %v373
  %v407 = vunpack.c.h.b16 %v373
  %v408 = vunpack.c.l.b16 %v374
  %v409 = vunpack.c.h.b16 %v374
  %v410 = vunpack.c.l.b16 %v375
  %v411 = vunpack.c.h.b16 %v375
  %v412 = vpack.c.b16 %v398, %v396
  %v413 = vpack.c.b16 %v399, %v397
  %v414 = vpack.c.b16 %v402, %v400
  %v415 = vpack.c.b16 %v403, %v401
  %v416 = vpack.c.b16 %v406, %v404
  %v417 = vpack.c.b16 %v407, %v405
  %v418 = vpack.c.b16 %v410, %v408
  %v419 = vpack.c.b16 %v411, %v409
  %vm428 = vcmask 523264
  %v430 = vsel %vm428, %v364, 0
  %v433 = vsel %vm428, %v365, 0
  %v436 = vsel %vm428, %v366, 0
  %v439 = vsel %vm428, %v367, 0
  %441 = vmatprep.subr.bf16.mxu0 %v413
  %442 = vmatpush1.bf16.msra.mxu0 %v412
  %443 = vmatprep.subr.bf16.mxu0 %v415
  %444 = vmatpush1.bf16.msra.mxu0 %v414
  %445 = vmatprep.subr.bf16.mxu0 %v417
  %446 = vmatpush1.bf16.msra.mxu0 %v416
  %447 = vmatprep.subr.bf16.mxu0 %v419
  %448 = vmatpush1.bf16.msra.mxu0 %v418
  %449 = vmatprep.subr.bf16.mxu0 0
  %450 = vmatpush1.bf16.msra.mxu0 0
  %451 = vmatprep.subr.bf16.mxu0 0
  %452 = vmatpush1.bf16.msra.mxu0 0
  %453 = vmatprep.subr.bf16.mxu0 0
  %454 = vmatpush1.bf16.msra.mxu0 0
  %455 = vmatprep.subr.bf16.mxu0 0
  %456 = vmatpush1.bf16.msra.mxu0 0
  %457 = vmatprep.subr.bf16.mxu0 0
  %458 = vmatpush1.bf16.msra.mxu0 0
  %459 = vmatprep.subr.bf16.mxu0 0
  %460 = vmatpush1.bf16.msra.mxu0 0
  %461 = vmatprep.subr.bf16.mxu0 0
  %462 = vmatpush1.bf16.msra.mxu0 0
  %463 = vmatprep.subr.bf16.mxu0 0
  %464 = vmatpush1.bf16.msra.mxu0 0
  %465 = vmatprep.subr.bf16.mxu0 0
  %466 = vmatpush1.bf16.msra.mxu0 0
  %467 = vmatprep.subr.bf16.mxu0 0
  %468 = vmatpush1.bf16.msra.mxu0 0
  %469 = vmatprep.subr.bf16.mxu0 0
  %470 = vmatpush1.bf16.msra.mxu0 0
  %471 = vmatprep.subr.bf16.mxu0 0
  %472 = vmatpush1.bf16.msra.mxu0 0
  %473 = vmatprep.mubr.bf16.mxu0 0
  %474 = vmatmul.mubr.bf16.gmra.mrb[0].mxu0 %v430
  %v475 = vpop.f32.mrb[0].mxu0
  %v476 = vadd.f32 %v381, %v475
  %v477 = vpop.f32.mrb[0].mxu0
  %v478 = vadd.f32 %v385, %v477
  %v479 = vpop.f32.mrb[0].mxu0
  %v480 = vadd.f32 %v381, %v479
  %v481 = vpop.f32.mrb[0].mxu0
  %v482 = vadd.f32 %v385, %v481
  %483 = vmatprep.mubr.bf16.mxu0 0
  %484 = vmatmul.mubr.bf16.gmra.mrb[0].mxu0 %v433
  %v485 = vpop.f32.mrb[0].mxu0
  %v486 = vadd.f32 %v381, %v485
  %v487 = vpop.f32.mrb[0].mxu0
  %v488 = vadd.f32 %v385, %v487
  %v489 = vpop.f32.mrb[0].mxu0
  %v490 = vadd.f32 %v381, %v489
  %v491 = vpop.f32.mrb[0].mxu0
  %v492 = vadd.f32 %v385, %v491
  %493 = vmatprep.mubr.bf16.mxu0 0
  %494 = vmatmul.mubr.bf16.gmra.mrb[0].mxu0 %v436
  %v495 = vpop.f32.mrb[0].mxu0
  %v496 = vadd.f32 %v381, %v495
  %v497 = vpop.f32.mrb[0].mxu0
  %v498 = vadd.f32 %v385, %v497
  %v499 = vpop.f32.mrb[0].mxu0
  %v500 = vadd.f32 %v381, %v499
  %v501 = vpop.f32.mrb[0].mxu0
  %v502 = vadd.f32 %v385, %v501
  %503 = vmatprep.mubr.bf16.mxu0 0
  %504 = vmatmul.mubr.bf16.gmra.mrb[0].mxu0 %v439
  %v505 = vpop.f32.mrb[0].mxu0
  %v506 = vadd.f32 %v381, %v505
  %v507 = vpop.f32.mrb[0].mxu0
  %v508 = vadd.f32 %v385, %v507
  %v509 = vpop.f32.mrb[0].mxu0
  %v510 = vadd.f32 %v381, %v509
  %v511 = vpop.f32.mrb[0].mxu0
  %v512 = vadd.f32 %v385, %v511
  %513 = vdwg.mxu0
  %514 = vst [vmem:[#allocation4] sm:$0xff] %v476
  %515 = vst [vmem:[#allocation4 + $0x8] sm:$0xff] %v478
  %516 = vst [vmem:[#allocation4 + $0x10] sm:$0xff] %v480
  %517 = vst [vmem:[#allocation4 + $0x18] sm:$0xff] %v482
  %518 = vst [vmem:[#allocation4 + $0x20] sm:$0xff] %v486
  %519 = vst [vmem:[#allocation4 + $0x28] sm:$0xff] %v488
  %520 = vst [vmem:[#allocation4 + $0x30] sm:$0xff] %v490
  %521 = vst [vmem:[#allocation4 + $0x38] sm:$0xff] %v492
  %522 = vst [vmem:[#allocation4 + $0x40] sm:$0xff] %v496
  %523 = vst [vmem:[#allocation4 + $0x48] sm:$0xff] %v498
  %524 = vst [vmem:[#allocation4 + $0x50] sm:$0xff] %v500
  %525 = vst [vmem:[#allocation4 + $0x58] sm:$0xff] %v502
  %526 = vst [vmem:[#allocation4 + $0x60] sm:$0xff] %v506
  %527 = vst [vmem:[#allocation4 + $0x68] sm:$0xff] %v508
  %528 = vst [vmem:[#allocation4 + $0x70] sm:$0xff] %v510
  %529 = vst [vmem:[#allocation4 + $0x78] sm:$0xff] %v512
  %v530 = vld [vmem:[%s6] sm:$0xff]
  %v531 = vld [vmem:[%s6 + $0x8] sm:$0xff]
  %v532 = vld [vmem:[%s6 + $0x10] sm:$0xff]
  %v533 = vld [vmem:[%s6 + $0x18] sm:$0xff]
  loop: start=0, step=1, limit=8
  $region77: #{sequence_classifier_forward.1} parent=0 // loop_pre_header
    _
  $region78: #{sequence_classifier_forward.1} parent=0 // loop_header
    %s535 = sphi 0, %s539
    %p536 = scmp.ge.s32.totalorder %s535, 8
    %v540 = vphi 0.0, %v676
    %v541 = vphi 0.0, %v677
    %v542 = vphi 0.0, %v664
    %v543 = vphi 0.0, %v665
  $region79: #{sequence_classifier_forward.1} parent=0 // loop_header_branch
    %538 = sbr.rel (%p536) target = $region83
  $region80: #{sequence_classifier_forward.1} parent=0 // loop_body
    %s544 = smul.u32 %s535, 8
    %s545 = ssub.s32 7, %s535
    %s546 = smul.u32 %s545, 8
    %v547 = vpack.c.bf16 %v541, %v540
    %549 = vrot.lane.b32.xlu0 %v547, 32
    %v550 = vpop.permute.xlu0 %549
    %v555 = vunpack.c.l.b16 %v530
    %v556 = vunpack.c.h.b16 %v530
    %v557 = vunpack.c.l.b16 %v531
    %v558 = vunpack.c.h.b16 %v531
    %v559 = vunpack.c.l.b16 %v532
    %v560 = vunpack.c.h.b16 %v532
    %v561 = vunpack.c.l.b16 %v533
    %v562 = vunpack.c.h.b16 %v533
    %v563 = vpack.c.b16 %v557, %v555
    %v564 = vpack.c.b16 %v558, %v556
    %v565 = vpack.c.b16 %v561, %v559
    %v566 = vpack.c.b16 %v562, %v560
    %vm571 = vcmask 261120
    %v573 = vsel %vm571, %v550, 0
    %575 = vmatprep.subr.bf16.mxu0 %v564
    %576 = vmatpush1.bf16.msra.mxu0 %v563
    %577 = vmatprep.subr.bf16.mxu0 %v566
    %578 = vmatpush1.bf16.msra.mxu0 %v565
    %579 = vmatprep.subr.bf16.mxu0 0
    %580 = vmatpush1.bf16.msra.mxu0 0
    %581 = vmatprep.subr.bf16.mxu0 0
    %582 = vmatpush1.bf16.msra.mxu0 0
    %583 = vmatprep.subr.bf16.mxu0 0
    %584 = vmatpush1.bf16.msra.mxu0 0
    %585 = vmatprep.subr.bf16.mxu0 0
    %586 = vmatpush1.bf16.msra.mxu0 0
    %587 = vmatprep.subr.bf16.mxu0 0
    %588 = vmatpush1.bf16.msra.mxu0 0
    %589 = vmatprep.subr.bf16.mxu0 0
    %590 = vmatpush1.bf16.msra.mxu0 0
    %591 = vmatprep.subr.bf16.mxu0 0
    %592 = vmatpush1.bf16.msra.mxu0 0
    %593 = vmatprep.subr.bf16.mxu0 0
    %594 = vmatpush1.bf16.msra.mxu0 0
    %595 = vmatprep.subr.bf16.mxu0 0
    %596 = vmatpush1.bf16.msra.mxu0 0
    %597 = vmatprep.subr.bf16.mxu0 0
    %598 = vmatpush1.bf16.msra.mxu0 0
    %599 = vmatprep.subr.bf16.mxu0 0
    %600 = vmatpush1.bf16.msra.mxu0 0
    %601 = vmatprep.subr.bf16.mxu0 0
    %602 = vmatpush1.bf16.msra.mxu0 0
    %603 = vmatprep.subr.bf16.mxu0 0
    %604 = vmatpush1.bf16.msra.mxu0 0
    %605 = vmatprep.subr.bf16.mxu0 0
    %606 = vmatpush1.bf16.msra.mxu0 0
    %607 = vmatprep.mubr.bf16.mxu0 0
    %608 = vmatmul.mubr.bf16.gmra.mrb[0].mxu0 %v573
    %v609 = vpop.f32.mrb[0].mxu0
    %v610 = vadd.f32 0.0, %v609
    %v611 = vpop.f32.mrb[0].mxu0
    %v612 = vpop.f32.mrb[0].mxu0
    %v613 = vpop.f32.mrb[0].mxu0
    %v614 = vadd.f32 0.0, %v613
    %615 = vdwg.mxu0
    %s616 = sshra.s32 %s544, 3
    %s617 = sand.u32 %s544, 7
    %s618 = smul.u32 %s616, 2
    %s619 = smul.addr %s618, 8
    %s620 = scalar_lea.vmem [#allocation4], %s619
    %v621 = vld [vmem:[%s620] sm:$0xff]
    %v622 = vadd.f32 %v621, %v610
    %s623 = sshra.s32 %s546, 3
    %s624 = sand.u32 %s546, 7
    %s625 = smul.u32 %s623, 2
    %s626 = smul.addr %s625, 8
    %s627 = scalar_lea.vmem [#allocation4], %s626
    %v628 = vld [vmem:[%s627 + $0x8] sm:$0xff]
    %v629 = vadd.f32 %v628, %v614
    %v630 = vxor.u32 %v622, 2147483648
    %v631 = vxor.u32 %v629, 2147483648
    %v632 = vmul.f32 %v630, 1.442695
    %v633 = vpow.pop %v632
    %v634 = vmul.f32 %v631, 1.442695
    %v635 = vpow.pop %v634
    %v636 = vadd.f32 %v633, 1.0
    %v637 = vadd.f32 %v635, 1.0
    %v638 = vrcp.pop %v636
    %v639 = vmul.f32 1.0, %v638
    %v640 = vrcp.pop %v637
    %v641 = vmul.f32 1.0, %v640
    %v642 = vtanh.pop %v622
    %v643 = vtanh.pop %v629
    %v644 = vmul.f32 %v639, %v542
    %v645 = vmul.f32 %v641, %v543
    %648 = vrot.lane.b32.xlu0 %v642, 64
    %v649 = vpop.permute.xlu0 %648
    %650 = vrot.lane.b32.xlu0 %v643, 64
    %v651 = vpop.permute.xlu0 %650
    %v654 = vmul.f32 %v639, %v649
    %v655 = vmul.f32 %v641, %v651
    %658 = vrot.lane.b32.xlu0 %v654, 32
    %v659 = vpop.permute.xlu0 %658
    %660 = vrot.lane.b32.xlu0 %v655, 32
    %v661 = vpop.permute.xlu0 %660
    %v664 = vadd.f32 %v644, %v659
    %v665 = vadd.f32 %v645, %v661
    %v666 = vtanh.pop %v664
    %v667 = vtanh.pop %v665
    %670 = vrot.lane.b32.xlu0 %v666, 64
    %v671 = vpop.permute.xlu0 %670
    %672 = vrot.lane.b32.xlu0 %v667, 64
    %v673 = vpop.permute.xlu0 %672
    %v676 = vmul.f32 %v639, %v671
    %v677 = vmul.f32 %v641, %v673
    %679 = vrot.lane.b32.xlu0 %v676, 32
    %v680 = vpop.permute.xlu0 %679
    %s682 = scalar_lea.vmem [#allocation3], %s544
    %683 = vst.msk [vmem:[%s682] sm:$0xff] %vm571, %v680
    %685 = vrot.lane.b32.xlu0 %v677, 64
    %v686 = vpop.permute.xlu0 %685
    %s688 = scalar_lea.vmem [#allocation3], %s546
    %vm689 = vcmask 523520
    %690 = vst.msk [vmem:[%s688] sm:$0xff] %vm689, %v686
  $region81: #{sequence_classifier_forward.1} parent=0 // loop_footer
    %s539 = sadd.s32 1, %s535
  $region82: #{sequence_classifier_forward.1} parent=0 // loop_footer_branch
    %534 = sbr.rel target = $region78
  $region83: #{sequence_classifier_forward.1} parent=0 // loop_exit
    _
  %v691 = vld [vmem:[#allocation3] sm:$0xff]
  %v692 = vld [vmem:[#allocation3 + $0x8] sm:$0xff]
  %v693 = vld [vmem:[#allocation3 + $0x10] sm:$0xff]
  %v694 = vld [vmem:[#allocation3 + $0x18] sm:$0xff]
  %v695 = vld [vmem:[#allocation3 + $0x20] sm:$0xff]
  %v696 = vld [vmem:[#allocation3 + $0x28] sm:$0xff]
  %v697 = vld [vmem:[#allocation3 + $0x30] sm:$0xff]
  %v698 = vld [vmem:[#allocation3 + $0x38] sm:$0xff]
  %v699 = vpack.c.bf16 %v692, %v691
  %v700 = vpack.c.bf16 %v694, %v693
  %v701 = vpack.c.bf16 %v696, %v695
  %v702 = vpack.c.bf16 %v698, %v697
  %v703 = vld [vmem:[%s7] sm:$0xff]
  %v704 = vld [vmem:[%s7 + $0x8] sm:$0xff]
  %v705 = vld [vmem:[%s7 + $0x10] sm:$0xff]
  %v706 = vld [vmem:[%s7 + $0x18] sm:$0xff]
  %v707 = vld [vmem:[%s7 + $0x20] sm:$0xff]
  %v708 = vld [vmem:[%s7 + $0x28] sm:$0xff]
  %v709 = vld [vmem:[%s7 + $0x30] sm:$0xff]
  %v710 = vld [vmem:[%s7 + $0x38] sm:$0xff]
  %v711 = vld [vmem:[%s8] sm:$0x3]
  %v713 = vlaneseq
  %v714 = vshrl.u32 %v713, 7
  %v715 = vsub.s32 0, %v714
  %v716 = vrot.slane %v711, %v715
  %v717 = vlaneseq
  %v718 = vshrl.u32 %v717, 7
  %v719 = vsub.s32 1, %v718
  %v720 = vrot.slane %v711, %v719
  %v731 = vunpack.c.l.b16 %v703
  %v732 = vunpack.c.h.b16 %v703
  %v733 = vunpack.c.l.b16 %v704
  %v734 = vunpack.c.h.b16 %v704
  %v735 = vunpack.c.l.b16 %v705
  %v736 = vunpack.c.h.b16 %v705
  %v737 = vunpack.c.l.b16 %v706
  %v738 = vunpack.c.h.b16 %v706
  %v739 = vunpack.c.l.b16 %v707
  %v740 = vunpack.c.h.b16 %v707
  %v741 = vunpack.c.l.b16 %v708
  %v742 = vunpack.c.h.b16 %v708
  %v743 = vunpack.c.l.b16 %v709
  %v744 = vunpack.c.h.b16 %v709
  %v745 = vunpack.c.l.b16 %v710
  %v746 = vunpack.c.h.b16 %v710
  %v747 = vpack.c.b16 %v733, %v731
  %v748 = vpack.c.b16 %v734, %v732
  %v749 = vpack.c.b16 %v737, %v735
  %v750 = vpack.c.b16 %v738, %v736
  %v751 = vpack.c.b16 %v741, %v739
  %v752 = vpack.c.b16 %v742, %v740
  %v753 = vpack.c.b16 %v745, %v743
  %v754 = vpack.c.b16 %v746, %v744
  %v764 = vsel %vm428, %v699, 0
  %v767 = vsel %vm428, %v700, 0
  %v770 = vsel %vm428, %v701, 0
  %v773 = vsel %vm428, %v702, 0
  %775 = vmatprep.subr.bf16.mxu0 %v748
  %776 = vmatpush1.bf16.msra.mxu0 %v747
  %777 = vmatprep.subr.bf16.mxu0 %v750
  %778 = vmatpush1.bf16.msra.mxu0 %v749
  %779 = vmatprep.subr.bf16.mxu0 %v752
  %780 = vmatpush1.bf16.msra.mxu0 %v751
  %781 = vmatprep.subr.bf16.mxu0 %v754
  %782 = vmatpush1.bf16.msra.mxu0 %v753
  %783 = vmatprep.subr.bf16.mxu0 0
  %784 = vmatpush1.bf16.msra.mxu0 0
  %785 = vmatprep.subr.bf16.mxu0 0
  %786 = vmatpush1.bf16.msra.mxu0 0
  %787 = vmatprep.subr.bf16.mxu0 0
  %788 = vmatpush1.bf16.msra.mxu0 0
  %789 = vmatprep.subr.bf16.mxu0 0
  %790 = vmatpush1.bf16.msra.mxu0 0
  %791 = vmatprep.subr.bf16.mxu0 0
  %792 = vmatpush1.bf16.msra.mxu0 0
  %793 = vmatprep.subr.bf16.mxu0 0
  %794 = vmatpush1.bf16.msra.mxu0 0
  %795 = vmatprep.subr.bf16.mxu0 0
  %796 = vmatpush1.bf16.msra.mxu0 0
  %797 = vmatprep.subr.bf16.mxu0 0
  %798 = vmatpush1.bf16.msra.mxu0 0
  %799 = vmatprep.subr.bf16.mxu0 0
  %800 = vmatpush1.bf16.msra.mxu0 0
  %801 = vmatprep.subr.bf16.mxu0 0
  %802 = vmatpush1.bf16.msra.mxu0 0
  %803 = vmatprep.subr.bf16.mxu0 0
  %804 = vmatpush1.bf16.msra.mxu0 0
  %805 = vmatprep.subr.bf16.mxu0 0
  %806 = vmatpush1.bf16.msra.mxu0 0
  %807 = vmatprep.mubr.bf16.mxu0 0
  %808 = vmatmul.mubr.bf16.gmra.mrb[0].mxu0 %v764
  %v809 = vpop.f32.mrb[0].mxu0
  %v810 = vadd.f32 %v716, %v809
  %v811 = vpop.f32.mrb[0].mxu0
  %v812 = vadd.f32 %v720, %v811
  %v813 = vpop.f32.mrb[0].mxu0
  %v814 = vadd.f32 %v716, %v813
  %v815 = vpop.f32.mrb[0].mxu0
  %v816 = vadd.f32 %v720, %v815
  %817 = vmatprep.mubr.bf16.mxu0 0
  %818 = vmatmul.mubr.bf16.gmra.mrb[0].mxu0 %v767
  %v819 = vpop.f32.mrb[0].mxu0
  %v820 = vadd.f32 %v716, %v819
  %v821 = vpop.f32.mrb[0].mxu0
  %v822 = vadd.f32 %v720, %v821
  %v823 = vpop.f32.mrb[0].mxu0
  %v824 = vadd.f32 %v716, %v823
  %v825 = vpop.f32.mrb[0].mxu0
  %v826 = vadd.f32 %v720, %v825
  %827 = vmatprep.mubr.bf16.mxu0 0
  %828 = vmatmul.mubr.bf16.gmra.mrb[0].mxu0 %v770
  %v829 = vpop.f32.mrb[0].mxu0
  %v830 = vadd.f32 %v716, %v829
  %v831 = vpop.f32.mrb[0].mxu0
  %v832 = vadd.f32 %v720, %v831
  %v833 = vpop.f32.mrb[0].mxu0
  %v834 = vadd.f32 %v716, %v833
  %v835 = vpop.f32.mrb[0].mxu0
  %v836 = vadd.f32 %v720, %v835
  %837 = vmatprep.mubr.bf16.mxu0 0
  %838 = vmatmul.mubr.bf16.gmra.mrb[0].mxu0 %v773
  %v839 = vpop.f32.mrb[0].mxu0
  %v840 = vadd.f32 %v716, %v839
  %v841 = vpop.f32.mrb[0].mxu0
  %v842 = vadd.f32 %v720, %v841
  %v843 = vpop.f32.mrb[0].mxu0
  %v844 = vadd.f32 %v716, %v843
  %v845 = vpop.f32.mrb[0].mxu0
  %v846 = vadd.f32 %v720, %v845
  %847 = vdwg.mxu0
  %848 = vst [vmem:[#allocation4] sm:$0xff] %v810
  %849 = vst [vmem:[#allocation4 + $0x8] sm:$0xff] %v812
  %850 = vst [vmem:[#allocation4 + $0x10] sm:$0xff] %v814
  %851 = vst [vmem:[#allocation4 + $0x18] sm:$0xff] %v816
  %852 = vst [vmem:[#allocation4 + $0x20] sm:$0xff] %v820
  %853 = vst [vmem:[#allocation4 + $0x28] sm:$0xff] %v822
  %854 = vst [vmem:[#allocation4 + $0x30] sm:$0xff] %v824
  %855 = vst [vmem:[#allocation4 + $0x38] sm:$0xff] %v826
  %856 = vst [vmem:[#allocation4 + $0x40] sm:$0xff] %v830
  %857 = vst [vmem:[#allocation4 + $0x48] sm:$0xff] %v832
  %858 = vst [vmem:[#allocation4 + $0x50] sm:$0xff] %v834
  %859 = vst [vmem:[#allocation4 + $0x58] sm:$0xff] %v836
  %860 = vst [vmem:[#allocation4 + $0x60] sm:$0xff] %v840
  %861 = vst [vmem:[#allocation4 + $0x68] sm:$0xff] %v842
  %862 = vst [vmem:[#allocation4 + $0x70] sm:$0xff] %v844
  %863 = vst [vmem:[#allocation4 + $0x78] sm:$0xff] %v846
  %v864 = vld [vmem:[%s9] sm:$0xff]
  %v865 = vld [vmem:[%s9 + $0x8] sm:$0xff]
  %v866 = vld [vmem:[%s9 + $0x10] sm:$0xff]
  %v867 = vld [vmem:[%s9 + $0x18] sm:$0xff]
  loop: start=0, step=1, limit=8
  $region84: #{sequence_classifier_forward.1} parent=0 // loop_pre_header
    _
  $region85: #{sequence_classifier_forward.1} parent=0 // loop_header
    %s869 = sphi 0, %s873
    %p870 = scmp.ge.s32.totalorder %s869, 8
    %v874 = vphi 0.0, %v1010
    %v875 = vphi 0.0, %v1011
    %v876 = vphi 0.0, %v998
    %v877 = vphi 0.0, %v999
  $region86: #{sequence_classifier_forward.1} parent=0 // loop_header_branch
    %872 = sbr.rel (%p870) target = $region90
  $region87: #{sequence_classifier_forward.1} parent=0 // loop_body
    %s878 = smul.u32 %s869, 8
    %s879 = ssub.s32 7, %s869
    %s880 = smul.u32 %s879, 8
    %v881 = vpack.c.bf16 %v875, %v874
    %883 = vrot.lane.b32.xlu0 %v881, 32
    %v884 = vpop.permute.xlu0 %883
    %v889 = vunpack.c.l.b16 %v864
    %v890 = vunpack.c.h.b16 %v864
    %v891 = vunpack.c.l.b16 %v865
    %v892 = vunpack.c.h.b16 %v865
    %v893 = vunpack.c.l.b16 %v866
    %v894 = vunpack.c.h.b16 %v866
    %v895 = vunpack.c.l.b16 %v867
    %v896 = vunpack.c.h.b16 %v867
    %v897 = vpack.c.b16 %v891, %v889
    %v898 = vpack.c.b16 %v892, %v890
    %v899 = vpack.c.b16 %v895, %v893
    %v900 = vpack.c.b16 %v896, %v894
    %vm905 = vcmask 261120
    %v907 = vsel %vm905, %v884, 0
    %909 = vmatprep.subr.bf16.mxu0 %v898
    %910 = vmatpush1.bf16.msra.mxu0 %v897
    %911 = vmatprep.subr.bf16.mxu0 %v900
    %912 = vmatpush1.bf16.msra.mxu0 %v899
    %913 = vmatprep.subr.bf16.mxu0 0
    %914 = vmatpush1.bf16.msra.mxu0 0
    %915 = vmatprep.subr.bf16.mxu0 0
    %916 = vmatpush1.bf16.msra.mxu0 0
    %917 = vmatprep.subr.bf16.mxu0 0
    %918 = vmatpush1.bf16.msra.mxu0 0
    %919 = vmatprep.subr.bf16.mxu0 0
    %920 = vmatpush1.bf16.msra.mxu0 0
    %921 = vmatprep.subr.bf16.mxu0 0
    %922 = vmatpush1.bf16.msra.mxu0 0
    %923 = vmatprep.subr.bf16.mxu0 0
    %924 = vmatpush1.bf16.msra.mxu0 0
    %925 = vmatprep.subr.bf16.mxu0 0
    %926 = vmatpush1.bf16.msra.mxu0 0
    %927 = vmatprep.subr.bf16.mxu0 0
    %928 = vmatpush1.bf16.msra.mxu0 0
    %929 = vmatprep.subr.bf16.mxu0 0
    %930 = vmatpush1.bf16.msra.mxu0 0
    %931 = vmatprep.subr.bf16.mxu0 0
    %932 = vmatpush1.bf16.msra.mxu0 0
    %933 = vmatprep.subr.bf16.mxu0 0
    %934 = vmatpush1.bf16.msra.mxu0 0
    %935 = vmatprep.subr.bf16.mxu0 0
    %936 = vmatpush1.bf16.msra.mxu0 0
    %937 = vmatprep.subr.bf16.mxu0 0
    %938 = vmatpush1.bf16.msra.mxu0 0
    %939 = vmatprep.subr.bf16.mxu0 0
    %940 = vmatpush1.bf16.msra.mxu0 0
    %941 = vmatprep.mubr.bf16.mxu0 0
    %942 = vmatmul.mubr.bf16.gmra.mrb[0].mxu0 %v907
    %v943 = vpop.f32.mrb[0].mxu0
    %v944 = vadd.f32 0.0, %v943
    %v945 = vpop.f32.mrb[0].mxu0
    %v946 = vpop.f32.mrb[0].mxu0
    %v947 = vpop.f32.mrb[0].mxu0
    %v948 = vadd.f32 0.0, %v947
    %949 = vdwg.mxu0
    %s950 = sshra.s32 %s878, 3
    %s951 = sand.u32 %s878, 7
    %s952 = smul.u32 %s950, 2
    %s953 = smul.addr %s952, 8
    %s954 = scalar_lea.vmem [#allocation4], %s953
    %v955 = vld [vmem:[%s954] sm:$0xff]
    %v956 = vadd.f32 %v955, %v944
    %s957 = sshra.s32 %s880, 3
    %s958 = sand.u32 %s880, 7
    %s959 = smul.u32 %s957, 2
    %s960 = smul.addr %s959, 8
    %s961 = scalar_lea.vmem [#allocation4], %s960
    %v962 = vld [vmem:[%s961 + $0x8] sm:$0xff]
    %v963 = vadd.f32 %v962, %v948
    %v964 = vxor.u32 %v956, 2147483648
    %v965 = vxor.u32 %v963, 2147483648
    %v966 = vmul.f32 %v964, 1.442695
    %v967 = vpow.pop %v966
    %v968 = vmul.f32 %v965, 1.442695
    %v969 = vpow.pop %v968
    %v970 = vadd.f32 %v967, 1.0
    %v971 = vadd.f32 %v969, 1.0
    %v972 = vrcp.pop %v970
    %v973 = vmul.f32 1.0, %v972
    %v974 = vrcp.pop %v971
    %v975 = vmul.f32 1.0, %v974
    %v976 = vtanh.pop %v956
    %v977 = vtanh.pop %v963
    %v978 = vmul.f32 %v973, %v876
    %v979 = vmul.f32 %v975, %v877
    %982 = vrot.lane.b32.xlu0 %v976, 64
    %v983 = vpop.permute.xlu0 %982
    %984 = vrot.lane.b32.xlu0 %v977, 64
    %v985 = vpop.permute.xlu0 %984
    %v988 = vmul.f32 %v973, %v983
    %v989 = vmul.f32 %v975, %v985
    %992 = vrot.lane.b32.xlu0 %v988, 32
    %v993 = vpop.permute.xlu0 %992
    %994 = vrot.lane.b32.xlu0 %v989, 32
    %v995 = vpop.permute.xlu0 %994
    %v998 = vadd.f32 %v978, %v993
    %v999 = vadd.f32 %v979, %v995
    %v1000 = vtanh.pop %v998
    %v1001 = vtanh.pop %v999
    %1004 = vrot.lane.b32.xlu0 %v1000, 64
    %v1005 = vpop.permute.xlu0 %1004
    %1006 = vrot.lane.b32.xlu0 %v1001, 64
    %v1007 = vpop.permute.xlu0 %1006
    %v1010 = vmul.f32 %v973, %v1005
    %v1011 = vmul.f32 %v975, %v1007
    %1013 = vrot.lane.b32.xlu0 %v1010, 32
    %v1014 = vpop.permute.xlu0 %1013
    %s1016 = scalar_lea.vmem [#allocation2], %s878
    %1017 = vst.msk [vmem:[%s1016] sm:$0xff] %vm905, %v1014
    %1019 = vrot.lane.b32.xlu0 %v1011, 64
    %v1020 = vpop.permute.xlu0 %1019
    %s1022 = scalar_lea.vmem [#allocation2], %s880
    %vm1023 = vcmask 523520
    %1024 = vst.msk [vmem:[%s1022] sm:$0xff] %vm1023, %v1020
  $region88: #{sequence_classifier_forward.1} parent=0 // loop_footer
    %s873 = sadd.s32 1, %s869
  $region89: #{sequence_classifier_forward.1} parent=0 // loop_footer_branch
    %868 = sbr.rel target = $region85
  $region90: #{sequence_classifier_forward.1} parent=0 // loop_exit
    _
  %v1025 = vld [vmem:[#allocation2] sm:$0xff]
  %v1026 = vld [vmem:[#allocation2 + $0x8] sm:$0xff]
  %v1027 = vld [vmem:[#allocation2 + $0x10] sm:$0xff]
  %v1028 = vld [vmem:[#allocation2 + $0x18] sm:$0xff]
  %v1029 = vld [vmem:[#allocation2 + $0x20] sm:$0xff]
  %v1030 = vld [vmem:[#allocation2 + $0x28] sm:$0xff]
  %v1031 = vld [vmem:[#allocation2 + $0x30] sm:$0xff]
  %v1032 = vld [vmem:[#allocation2 + $0x38] sm:$0xff]
  %v1033 = vpack.c.bf16 %v1026, %v1025
  %v1034 = vpack.c.bf16 %v1028, %v1027
  %v1035 = vpack.c.bf16 %v1030, %v1029
  %v1036 = vpack.c.bf16 %v1032, %v1031
  %v1037 = vld [vmem:[%s10] sm:$0xff]
  %v1038 = vld [vmem:[%s10 + $0x8] sm:$0xff]
  %v1039 = vld [vmem:[%s10 + $0x10] sm:$0xff]
  %v1040 = vld [vmem:[%s10 + $0x18] sm:$0xff]
  %v1041 = vld [vmem:[%s10 + $0x20] sm:$0xff]
  %v1042 = vld [vmem:[%s10 + $0x28] sm:$0xff]
  %v1043 = vld [vmem:[%s10 + $0x30] sm:$0xff]
  %v1044 = vld [vmem:[%s10 + $0x38] sm:$0xff]
  %v1045 = vld [vmem:[%s11] sm:$0x3]
  %v1047 = vlaneseq
  %v1048 = vshrl.u32 %v1047, 7
  %v1049 = vsub.s32 0, %v1048
  %v1050 = vrot.slane %v1045, %v1049
  %v1051 = vlaneseq
  %v1052 = vshrl.u32 %v1051, 7
  %v1053 = vsub.s32 1, %v1052
  %v1054 = vrot.slane %v1045, %v1053
  %v1065 = vunpack.c.l.b16 %v1037
  %v1066 = vunpack.c.h.b16 %v1037
  %v1067 = vunpack.c.l.b16 %v1038
  %v1068 = vunpack.c.h.b16 %v1038
  %v1069 = vunpack.c.l.b16 %v1039
  %v1070 = vunpack.c.h.b16 %v1039
  %v1071 = vunpack.c.l.b16 %v1040
  %v1072 = vunpack.c.h.b16 %v1040
  %v1073 = vunpack.c.l.b16 %v1041
  %v1074 = vunpack.c.h.b16 %v1041
  %v1075 = vunpack.c.l.b16 %v1042
  %v1076 = vunpack.c.h.b16 %v1042
  %v1077 = vunpack.c.l.b16 %v1043
  %v1078 = vunpack.c.h.b16 %v1043
  %v1079 = vunpack.c.l.b16 %v1044
  %v1080 = vunpack.c.h.b16 %v1044
  %v1081 = vpack.c.b16 %v1067, %v1065
  %v1082 = vpack.c.b16 %v1068, %v1066
  %v1083 = vpack.c.b16 %v1071, %v1069
  %v1084 = vpack.c.b16 %v1072, %v1070
  %v1085 = vpack.c.b16 %v1075, %v1073
  %v1086 = vpack.c.b16 %v1076, %v1074
  %v1087 = vpack.c.b16 %v1079, %v1077
  %v1088 = vpack.c.b16 %v1080, %v1078
  %v1098 = vsel %vm428, %v1033, 0
  %v1101 = vsel %vm428, %v1034, 0
  %v1104 = vsel %vm428, %v1035, 0
  %v1107 = vsel %vm428, %v1036, 0
  %1109 = vmatprep.subr.bf16.mxu0 %v1082
  %1110 = vmatpush1.bf16.msra.mxu0 %v1081
  %1111 = vmatprep.subr.bf16.mxu0 %v1084
  %1112 = vmatpush1.bf16.msra.mxu0 %v1083
  %1113 = vmatprep.subr.bf16.mxu0 %v1086
  %1114 = vmatpush1.bf16.msra.mxu0 %v1085
  %1115 = vmatprep.subr.bf16.mxu0 %v1088
  %1116 = vmatpush1.bf16.msra.mxu0 %v1087
  %1117 = vmatprep.subr.bf16.mxu0 0
  %1118 = vmatpush1.bf16.msra.mxu0 0
  %1119 = vmatprep.subr.bf16.mxu0 0
  %1120 = vmatpush1.bf16.msra.mxu0 0
  %1121 = vmatprep.subr.bf16.mxu0 0
  %1122 = vmatpush1.bf16.msra.mxu0 0
  %1123 = vmatprep.subr.bf16.mxu0 0
  %1124 = vmatpush1.bf16.msra.mxu0 0
  %1125 = vmatprep.subr.bf16.mxu0 0
  %1126 = vmatpush1.bf16.msra.mxu0 0
  %1127 = vmatprep.subr.bf16.mxu0 0
  %1128 = vmatpush1.bf16.msra.mxu0 0
  %1129 = vmatprep.subr.bf16.mxu0 0
  %1130 = vmatpush1.bf16.msra.mxu0 0
  %1131 = vmatprep.subr.bf16.mxu0 0
  %1132 = vmatpush1.bf16.msra.mxu0 0
  %1133 = vmatprep.subr.bf16.mxu0 0
  %1134 = vmatpush1.bf16.msra.mxu0 0
  %1135 = vmatprep.subr.bf16.mxu0 0
  %1136 = vmatpush1.bf16.msra.mxu0 0
  %1137 = vmatprep.subr.bf16.mxu0 0
  %1138 = vmatpush1.bf16.msra.mxu0 0
  %1139 = vmatprep.subr.bf16.mxu0 0
  %1140 = vmatpush1.bf16.msra.mxu0 0
  %1141 = vmatprep.mubr.bf16.mxu0 0
  %1142 = vmatmul.mubr.bf16.gmra.mrb[0].mxu0 %v1098
  %v1143 = vpop.f32.mrb[0].mxu0
  %v1144 = vadd.f32 %v1050, %v1143
  %v1145 = vpop.f32.mrb[0].mxu0
  %v1146 = vadd.f32 %v1054, %v1145
  %v1147 = vpop.f32.mrb[0].mxu0
  %v1148 = vadd.f32 %v1050, %v1147
  %v1149 = vpop.f32.mrb[0].mxu0
  %v1150 = vadd.f32 %v1054, %v1149
  %1151 = vmatprep.mubr.bf16.mxu0 0
  %1152 = vmatmul.mubr.bf16.gmra.mrb[0].mxu0 %v1101
  %v1153 = vpop.f32.mrb[0].mxu0
  %v1154 = vadd.f32 %v1050, %v1153
  %v1155 = vpop.f32.mrb[0].mxu0
  %v1156 = vadd.f32 %v1054, %v1155
  %v1157 = vpop.f32.mrb[0].mxu0
  %v1158 = vadd.f32 %v1050, %v1157
  %v1159 = vpop.f32.mrb[0].mxu0
  %v1160 = vadd.f32 %v1054, %v1159
  %1161 = vmatprep.mubr.bf16.mxu0 0
  %1162 = vmatmul.mubr.bf16.gmra.mrb[0].mxu0 %v1104
  %v1163 = vpop.f32.mrb[0].mxu0
  %v1164 = vadd.f32 %v1050, %v1163
  %v1165 = vpop.f32.mrb[0].mxu0
  %v1166 = vadd.f32 %v1054, %v1165
  %v1167 = vpop.f32.mrb[0].mxu0
  %v1168 = vadd.f32 %v1050, %v1167
  %v1169 = vpop.f32.mrb[0].mxu0
  %v1170 = vadd.f32 %v1054, %v1169
  %1171 = vmatprep.mubr.bf16.mxu0 0
  %1172 = vmatmul.mubr.bf16.gmra.mrb[0].mxu0 %v1107
  %v1173 = vpop.f32.mrb[0].mxu0
  %v1174 = vadd.f32 %v1050, %v1173
  %v1175 = vpop.f32.mrb[0].mxu0
  %v1176 = vadd.f32 %v1054, %v1175
  %v1177 = vpop.f32.mrb[0].mxu0
  %v1178 = vadd.f32 %v1050, %v1177
  %v1179 = vpop.f32.mrb[0].mxu0
  %v1180 = vadd.f32 %v1054, %v1179
  %1181 = vdwg.mxu0
  %1182 = vst [vmem:[#allocation4] sm:$0xff] %v1144
  %1183 = vst [vmem:[#allocation4 + $0x8] sm:$0xff] %v1146
  %1184 = vst [vmem:[#allocation4 + $0x10] sm:$0xff] %v1148
  %1185 = vst [vmem:[#allocation4 + $0x18] sm:$0xff] %v1150
  %1186 = vst [vmem:[#allocation4 + $0x20] sm:$0xff] %v1154
  %1187 = vst [vmem:[#allocation4 + $0x28] sm:$0xff] %v1156
  %1188 = vst [vmem:[#allocation4 + $0x30] sm:$0xff] %v1158
  %1189 = vst [vmem:[#allocation4 + $0x38] sm:$0xff] %v1160
  %1190 = vst [vmem:[#allocation4 + $0x40] sm:$0xff] %v1164
  %1191 = vst [vmem:[#allocation4 + $0x48] sm:$0xff] %v1166
  %1192 = vst [vmem:[#allocation4 + $0x50] sm:$0xff] %v1168
  %1193 = vst [vmem:[#allocation4 + $0x58] sm:$0xff] %v1170
  %1194 = vst [vmem:[#allocation4 + $0x60] sm:$0xff] %v1174
  %1195 = vst [vmem:[#allocation4 + $0x68] sm:$0xff] %v1176
  %1196 = vst [vmem:[#allocation4 + $0x70] sm:$0xff] %v1178
  %1197 = vst [vmem:[#allocation4 + $0x78] sm:$0xff] %v1180
  %v1198 = vld [vmem:[%s12] sm:$0xff]
  %v1199 = vld [vmem:[%s12 + $0x8] sm:$0xff]
  %v1200 = vld [vmem:[%s12 + $0x10] sm:$0xff]
  %v1201 = vld [vmem:[%s12 + $0x18] sm:$0xff]
  loop: start=0, step=1, limit=8
  $region91: #{sequence_classifier_forward.1} parent=0 // loop_pre_header
    _
  $region92: #{sequence_classifier_forward.1} parent=0 // loop_header
    %s1203 = sphi 0, %s1207
    %p1204 = scmp.ge.s32.totalorder %s1203, 8
    %v1208 = vphi 0.0, %v1344
    %v1209 = vphi 0.0, %v1345
    %v1210 = vphi 0.0, %v1332
    %v1211 = vphi 0.0, %v1333
  $region93: #{sequence_classifier_forward.1} parent=0 // loop_header_branch
    %1206 = sbr.rel (%p1204) target = $region97
  $region94: #{sequence_classifier_forward.1} parent=0 // loop_body
    %s1212 = smul.u32 %s1203, 8
    %s1213 = ssub.s32 7, %s1203
    %s1214 = smul.u32 %s1213, 8
    %v1215 = vpack.c.bf16 %v1209, %v1208
    %1217 = vrot.lane.b32.xlu0 %v1215, 32
    %v1218 = vpop.permute.xlu0 %1217
    %v1223 = vunpack.c.l.b16 %v1198
    %v1224 = vunpack.c.h.b16 %v1198
    %v1225 = vunpack.c.l.b16 %v1199
    %v1226 = vunpack.c.h.b16 %v1199
    %v1227 = vunpack.c.l.b16 %v1200
    %v1228 = vunpack.c.h.b16 %v1200
    %v1229 = vunpack.c.l.b16 %v1201
    %v1230 = vunpack.c.h.b16 %v1201
    %v1231 = vpack.c.b16 %v1225, %v1223
    %v1232 = vpack.c.b16 %v1226, %v1224
    %v1233 = vpack.c.b16 %v1229, %v1227
    %v1234 = vpack.c.b16 %v1230, %v1228
    %vm1239 = vcmask 261120
    %v1241 = vsel %vm1239, %v1218, 0
    %1243 = vmatprep.subr.bf16.mxu0 %v1232
    %1244 = vmatpush1.bf16.msra.mxu0 %v1231
    %1245 = vmatprep.subr.bf16.mxu0 %v1234
    %1246 = vmatpush1.bf16.msra.mxu0 %v1233
    %1247 = vmatprep.subr.bf16.mxu0 0
    %1248 = vmatpush1.bf16.msra.mxu0 0
    %1249 = vmatprep.subr.bf16.mxu0 0
    %1250 = vmatpush1.bf16.msra.mxu0 0
    %1251 = vmatprep.subr.bf16.mxu0 0
    %1252 = vmatpush1.bf16.msra.mxu0 0
    %1253 = vmatprep.subr.bf16.mxu0 0
    %1254 = vmatpush1.bf16.msra.mxu0 0
    %1255 = vmatprep.subr.bf16.mxu0 0
    %1256 = vmatpush1.bf16.msra.mxu0 0
    %1257 = vmatprep.subr.bf16.mxu0 0
    %1258 = vmatpush1.bf16.msra.mxu0 0
    %1259 = vmatprep.subr.bf16.mxu0 0
    %1260 = vmatpush1.bf16.msra.mxu0 0
    %1261 = vmatprep.subr.bf16.mxu0 0
    %1262 = vmatpush1.bf16.msra.mxu0 0
    %1263 = vmatprep.subr.bf16.mxu0 0
    %1264 = vmatpush1.bf16.msra.mxu0 0
    %1265 = vmatprep.subr.bf16.mxu0 0
    %1266 = vmatpush1.bf16.msra.mxu0 0
    %1267 = vmatprep.subr.bf16.mxu0 0
    %1268 = vmatpush1.bf16.msra.mxu0 0
    %1269 = vmatprep.subr.bf16.mxu0 0
    %1270 = vmatpush1.bf16.msra.mxu0 0
    %1271 = vmatprep.subr.bf16.mxu0 0
    %1272 = vmatpush1.bf16.msra.mxu0 0
    %1273 = vmatprep.subr.bf16.mxu0 0
    %1274 = vmatpush1.bf16.msra.mxu0 0
    %1275 = vmatprep.mubr.bf16.mxu0 0
    %1276 = vmatmul.mubr.bf16.gmra.mrb[0].mxu0 %v1241
    %v1277 = vpop.f32.mrb[0].mxu0
    %v1278 = vadd.f32 0.0, %v1277
    %v1279 = vpop.f32.mrb[0].mxu0
    %v1280 = vpop.f32.mrb[0].mxu0
    %v1281 = vpop.f32.mrb[0].mxu0
    %v1282 = vadd.f32 0.0, %v1281
    %1283 = vdwg.mxu0
    %s1284 = sshra.s32 %s1212, 3
    %s1285 = sand.u32 %s1212, 7
    %s1286 = smul.u32 %s1284, 2
    %s1287 = smul.addr %s1286, 8
    %s1288 = scalar_lea.vmem [#allocation4], %s1287
    %v1289 = vld [vmem:[%s1288] sm:$0xff]
    %v1290 = vadd.f32 %v1289, %v1278
    %s1291 = sshra.s32 %s1214, 3
    %s1292 = sand.u32 %s1214, 7
    %s1293 = smul.u32 %s1291, 2
    %s1294 = smul.addr %s1293, 8
    %s1295 = scalar_lea.vmem [#allocation4], %s1294
    %v1296 = vld [vmem:[%s1295 + $0x8] sm:$0xff]
    %v1297 = vadd.f32 %v1296, %v1282
    %v1298 = vxor.u32 %v1290, 2147483648
    %v1299 = vxor.u32 %v1297, 2147483648
    %v1300 = vmul.f32 %v1298, 1.442695
    %v1301 = vpow.pop %v1300
    %v1302 = vmul.f32 %v1299, 1.442695
    %v1303 = vpow.pop %v1302
    %v1304 = vadd.f32 %v1301, 1.0
    %v1305 = vadd.f32 %v1303, 1.0
    %v1306 = vrcp.pop %v1304
    %v1307 = vmul.f32 1.0, %v1306
    %v1308 = vrcp.pop %v1305
    %v1309 = vmul.f32 1.0, %v1308
    %v1310 = vtanh.pop %v1290
    %v1311 = vtanh.pop %v1297
    %v1312 = vmul.f32 %v1307, %v1210
    %v1313 = vmul.f32 %v1309, %v1211
    %1316 = vrot.lane.b32.xlu0 %v1310, 64
    %v1317 = vpop.permute.xlu0 %1316
    %1318 = vrot.lane.b32.xlu0 %v1311, 64
    %v1319 = vpop.permute.xlu0 %1318
    %v1322 = vmul.f32 %v1307, %v1317
    %v1323 = vmul.f32 %v1309, %v1319
    %1326 = vrot.lane.b32.xlu0 %v1322, 32
    %v1327 = vpop.permute.xlu0 %1326
    %1328 = vrot.lane.b32.xlu0 %v1323, 32
    %v1329 = vpop.permute.xlu0 %1328
    %v1332 = vadd.f32 %v1312, %v1327
    %v1333 = vadd.f32 %v1313, %v1329
    %v1334 = vtanh.pop %v1332
    %v1335 = vtanh.pop %v1333
    %1338 = vrot.lane.b32.xlu0 %v1334, 64
    %v1339 = vpop.permute.xlu0 %1338
    %1340 = vrot.lane.b32.xlu0 %v1335, 64
    %v1341 = vpop.permute.xlu0 %1340
    %v1344 = vmul.f32 %v1307, %v1339
    %v1345 = vmul.f32 %v1309, %v1341
    %1347 = vrot.lane.b32.xlu0 %v1344, 32
    %v1348 = vpop.permute.xlu0 %1347
    %s1350 = scalar_lea.vmem [#allocation3], %s1212
    %1351 = vst.msk [vmem:[%s1350] sm:$0xff] %vm1239, %v1348
    %1353 = vrot.lane.b32.xlu0 %v1345, 64
    %v1354 = vpop.permute.xlu0 %1353
    %s1356 = scalar_lea.vmem [#allocation3], %s1214
    %vm1357 = vcmask 523520
    %1358 = vst.msk [vmem:[%s1356] sm:$0xff] %vm1357, %v1354
  $region95: #{sequence_classifier_forward.1} parent=0 // loop_footer
    %s1207 = sadd.s32 1, %s1203
  $region96: #{sequence_classifier_forward.1} parent=0 // loop_footer_branch
    %1202 = sbr.rel target = $region92
  $region97: #{sequence_classifier_forward.1} parent=0 // loop_exit
    _
  %v1359 = vld [vmem:[#allocation3 + $0x38] sm:$0xff]
  %v1360 = vmax.f32 %v1359, 0.0
  %v1361 = vld [vmem:[%s13] sm:$0x1]
  %v1362 = vmul.f32 %v1361, 0.999995
  %v1364 = vlaneseq
  %v1365 = vshrl.u32 %v1364, 7
  %v1366 = vsub.s32 0, %v1365
  %v1367 = vrot.slane %v1362, %v1366
  %v1369 = vmul.f32 %v1360, %v1367
  %v1370 = vld [vmem:[%s14] sm:$0x1]
  %v1372 = vlaneseq
  %v1373 = vshrl.u32 %v1372, 7
  %v1374 = vsub.s32 0, %v1373
  %v1375 = vrot.slane %v1370, %v1374
  %v1377 = vadd.f32 %v1369, %v1375
  %v1378 = vpack.c.bf16 %v1377, %v1377
  %v1379 = vld [vmem:[%s15] sm:$0xf]
  %v1380 = vld [vmem:[%s15 + $0x4] sm:$0xf]
  %v1381 = vld [vmem:[%s15 + $0x8] sm:$0xf]
  %v1382 = vld [vmem:[%s15 + $0xc] sm:$0xf]
  %v1383 = vld [vmem:[%s15 + $0x10] sm:$0xf]
  %v1384 = vld [vmem:[%s15 + $0x14] sm:$0xf]
  %v1385 = vld [vmem:[%s15 + $0x18] sm:$0xf]
  %v1386 = vld [vmem:[%s15 + $0x1c] sm:$0xf]
  %v1387 = vld [vmem:[%s16] sm:$0x1]
  %v1389 = vlaneseq
  %v1390 = vshrl.u32 %v1389, 7
  %v1391 = vsub.s32 0, %v1390
  %v1392 = vrot.slane %v1387, %v1391
  %v1402 = vunpack.c.l.b16 %v1379
  %v1403 = vunpack.c.l.b16 %v1380
  %v1404 = vunpack.c.l.b16 %v1381
  %v1405 = vunpack.c.l.b16 %v1382
  %v1406 = vunpack.c.l.b16 %v1383
  %v1407 = vunpack.c.l.b16 %v1384
  %v1408 = vunpack.c.l.b16 %v1385
  %v1409 = vunpack.c.l.b16 %v1386
  %v1410 = vpack.c.b16 %v1403, %v1402
  %v1411 = vpack.c.b16 %v1405, %v1404
  %v1412 = vpack.c.b16 %v1407, %v1406
  %v1413 = vpack.c.b16 %v1409, %v1408
  %v1419 = vsel %vm428, %v1378, 0
  %1421 = vmatprep.subr.bf16.mxu0 0
  %1422 = vmatpush1.bf16.msra.mxu0 %v1410
  %1423 = vmatprep.subr.bf16.mxu0 0
  %1424 = vmatpush1.bf16.msra.mxu0 %v1411
  %1425 = vmatprep.subr.bf16.mxu0 0
  %1426 = vmatpush1.bf16.msra.mxu0 %v1412
  %1427 = vmatprep.subr.bf16.mxu0 0
  %1428 = vmatpush1.bf16.msra.mxu0 %v1413
  %1429 = vmatprep.subr.bf16.mxu0 0
  %1430 = vmatpush1.bf16.msra.mxu0 0
  %1431 = vmatprep.subr.bf16.mxu0 0
  %1432 = vmatpush1.bf16.msra.mxu0 0
  %1433 = vmatprep.subr.bf16.mxu0 0
  %1434 = vmatpush1.bf16.msra.mxu0 0
  %1435 = vmatprep.subr.bf16.mxu0 0
  %1436 = vmatpush1.bf16.msra.mxu0 0
  %1437 = vmatprep.subr.bf16.mxu0 0
  %1438 = vmatpush1.bf16.msra.mxu0 0
  %1439 = vmatprep.subr.bf16.mxu0 0
  %1440 = vmatpush1.bf16.msra.mxu0 0
  %1441 = vmatprep.subr.bf16.mxu0 0
  %1442 = vmatpush1.bf16.msra.mxu0 0
  %1443 = vmatprep.subr.bf16.mxu0 0
  %1444 = vmatpush1.bf16.msra.mxu0 0
  %1445 = vmatprep.subr.bf16.mxu0 0
  %1446 = vmatpush1.bf16.msra.mxu0 0
  %1447 = vmatprep.subr.bf16.mxu0 0
  %1448 = vmatpush1.bf16.msra.mxu0 0
  %1449 = vmatprep.subr.bf16.mxu0 0
  %1450 = vmatpush1.bf16.msra.mxu0 0
  %1451 = vmatprep.subr.bf16.mxu0 0
  %1452 = vmatpush1.bf16.msra.mxu0 0
  %1453 = vmatprep.mubr.bf16.mxu0 0
  %1454 = vmatmul.mubr.bf16.gmra.mrb[0].mxu0 %v1419
  %v1455 = vpop.f32.mrb[0].mxu0
  %v1456 = vadd.f32 %v1392, %v1455
  %v1457 = vpop.f32.mrb[0].mxu0
  %v1458 = vpop.f32.mrb[0].mxu0
  %v1459 = vpop.f32.mrb[0].mxu0
  %1460 = vdwg.mxu0
  %1461 = vmax.xlane.f32.xlu0 %v1456
  %v1462 = vpop.xlane.xlu0 %1461
  %v1463 = vsub.f32 %v1456, %v1462
  %v1464 = vmul.f32 %v1463, 1.442695
  %v1465 = vpow.pop %v1464
  %1466 = vadd.xlane.f32.xlu0 %v1465
  %v1467 = vpop.xlane.xlu0 %1466
  %v1468 = vlog2.pop %v1467
  %v1469 = vmul.f32 %v1468, 0.6931472
  %v1470 = vadd.f32 %v1462, %v1469
  %v1471 = vsub.f32 %v1456, %v1470
  %1472 = vst [vmem:[%s17] sm:$0xff] %v1471
  // Predicated region
  $region98: #{sequence_classifier_forward.1} parent=0 // pred_check
    _
  $region99: #{sequence_classifier_forward.1} parent=0 // pred_check_branch
    %1474 = sbr.rel (0) target = $region101
  $region100: #{sequence_classifier_forward.1} parent=0 // pred_region
    _
  $region101: #{sequence_classifier_forward.1} parent=0 // pred_fallthru
    _
  // Predicated region
  $region102: #{sequence_classifier_forward.1} parent=0 // pred_check
    _
  $region103: #{sequence_classifier_forward.1} parent=0 // pred_check_branch
    %1476 = sbr.rel (0) target = $region105
  $region104: #{sequence_classifier_forward.1} parent=0 // pred_region
    _
  $region105: #{sequence_classifier_forward.1} parent=0 // pred_fallthru
    _

</llo_original>
